<compile_context>
chip_gen: v7x
topology: tpu7x:2x2x1
jax: 0.10.0
libtpu: 0.0.40
codegen_flags: <defaults>
</compile_context>

<pallas_src>
import functools

import jax
import jax.numpy as jnp
from jax.experimental import pallas as pl
from jax.experimental.pallas import tpu as pltpu

_LANE = 128
_SUBLANE = 8

_COMPILER_PARAMS = pltpu.CompilerParams(
    dimension_semantics=("parallel",),      # batch axis -> both TCs on v7x, no-op on v5e/v6e
    vmem_limit_bytes=32 * 1024 * 1024,      # per-image footprint here is < 1 MiB
)


def _round_up(x, m):
    return (x + m - 1) // m * m


# ----------------------------------------------------------------------------
# In-kernel helpers
# ----------------------------------------------------------------------------
def _tap_patches(buf_ref, side, hw, mask_l, mask_r):
    """9-tap im2col (tap-major) from a flat row-major buffer with a vertical zero halo.

    buf_ref : (C, Lbuf) bf16; the image occupies lanes [side+1, side+1+hw), rest is 0.
    mask_l / mask_r : (1, hw) bool — column validity for taps dx=0 / dx=2 (the lane
    window trick wraps one pixel across row boundaries, which the mask zeroes).
    Returns (9*C, hw) bf16 whose row order matches a (Cout,3,3,C)->(Cout,9*C) weight.
    """
    pieces = []
    for dy in range(3):
        for dx in range(3):
            start = dy * side + dx                         # static lane offset of this tap
            piece = buf_ref[:, start:start + hw]           # (C, hw) bf16
            if dx == 0:        # source column x-1 -> invalid at x == 0
                piece = jnp.where(mask_l, piece, 0)
            elif dx == 2:      # source column x+1 -> invalid at x == side-1
                piece = jnp.where(mask_r, piece, 0)
            pieces.append(piece)
    return jnp.concatenate(pieces, axis=0)


def _noise_regressor_kernel(x_ref, w1_ref, w2_ref, wd_ref, wt_ref,
                            pool_ref, up_ref, mask_f_ref, mask_h_ref,
                            o_ref,
                            xbuf_ref, p1buf_ref, catbuf_ref,
                            *, S, Cin, C0, C1):
    Sh = S // 2
    HW, HWh = S * S, Sh * Sh
    base, base_h = S + 1, Sh + 1

    # Column-validity masks (built once in the wrapper, converted to bool once here).
    mf = mask_f_ref[...]
    mlf, mrf = mf[0:1, :] > 0.5, mf[1:2, :] > 0.5
    mh = mask_h_ref[...]
    mlh, mrh = mh[0:1, :] > 0.5, mh[1:2, :] > 0.5

    # ---- enc1: halo pad in VMEM (never in HBM), im2col, ONE MXU matmul + ReLU ----
    xbuf_ref[...] = jnp.zeros_like(xbuf_ref)
    xbuf_ref[:Cin, base:base + HW] = x_ref[...]
    patch1 = _tap_patches(xbuf_ref, S, HW, mlf, mrf)                     # (9*CinP, HW)
    e1 = jnp.maximum(
        jnp.dot(w1_ref[...], patch1, preferred_element_type=jnp.float32), 0.0)
    e1_bf = e1.astype(jnp.bfloat16)                                      # (C0, HW)

    # ---- 2x2 average pool as a matmul against a constant pooling matrix ----
    p1 = jnp.dot(e1_bf, pool_ref[...], preferred_element_type=jnp.float32)   # (C0, HWh)

    # ---- enc2 at half resolution ----
    p1buf_ref[...] = jnp.zeros_like(p1buf_ref)
    p1buf_ref[:, base_h:base_h + HWh] = p1.astype(jnp.bfloat16)
    patch2 = _tap_patches(p1buf_ref, Sh, HWh, mlh, mrh)                  # (9*C0, HWh)
    e2 = jnp.maximum(
        jnp.dot(w2_ref[...], patch2, preferred_element_type=jnp.float32), 0.0)

    # ---- nearest x2 upsample as a matmul; decoder conv on [e1, up(e2)] (no HBM concat) ----
    u2 = jnp.dot(e2.astype(jnp.bfloat16), up_ref[...],
                 preferred_element_type=jnp.float32)                     # (C1, HW)
    catbuf_ref[...] = jnp.zeros_like(catbuf_ref)
    catbuf_ref[:C0, base:base + HW] = e1_bf
    catbuf_ref[C0:, base:base + HW] = u2.astype(jnp.bfloat16)
    patchd = _tap_patches(catbuf_ref, S, HW, mlf, mrf)                   # (9*(C0+C1), HW)
    d1 = jnp.maximum(
        jnp.dot(wd_ref[...], patchd, preferred_element_type=jnp.float32), 0.0)

    # ---- AdaptiveAvgPool2d(1) + 1x1 tail, kept fully f32 (matches PyTorch) ----
    pooled = jnp.mean(d1, axis=1, keepdims=True)                         # (C0, 1) f32
    y = jnp.sum(wt_ref[...] * pooled, axis=0, keepdims=True)             # (1, 128) lane-dense
    o_ref[...] = y.astype(o_ref.dtype)


# ----------------------------------------------------------------------------
# Wrapper: weight/constant prep + the single pallas_call
# ----------------------------------------------------------------------------
def _conv_w_mat(w_oihw, cin_pad=None):
    """PyTorch (Cout, Cin, 3, 3) -> (Cout, 9*Cin) bf16, column index = (dy*3+dx)*Cin + ci."""
    cout, cin, kh, kw = w_oihw.shape
    w = jnp.transpose(w_oihw, (0, 2, 3, 1))                              # (Cout, 3, 3, Cin)
    if cin_pad is not None and cin_pad > cin:
        w = jnp.pad(w, ((0, 0), (0, 0), (0, 0), (0, cin_pad - cin)))
        cin = cin_pad
    return w.reshape(cout, kh * kw * cin).astype(jnp.bfloat16)


def noise_regressor_fused(x_flat, params, S):
    """x_flat: (N, Cin, S*S) bf16, row-major flattened crop. Returns (N, 4) f32."""
    N, Cin, HW = x_flat.shape
    Sh = S // 2
    HWh = Sh * Sh
    C0 = params["enc1"].shape[0]
    C1 = params["enc2"].shape[0]
    n_out = params["tail"].shape[0]
    assert n_out <= _LANE
    cin_p = _round_up(Cin, _SUBLANE)
    lbuf = HW + 4 * S          # >= HW + 2*S + 2 -> room for all 9 tap windows + zero halo
    lbuf_h = HWh + 4 * Sh

    w1 = _conv_w_mat(params["enc1"], cin_p)                              # (C0, 9*cin_p)
    w2 = _conv_w_mat(params["enc2"])                                     # (C1, 9*C0)
    wd = _conv_w_mat(params["dec1"])                                     # (C0, 9*(C0+C1))
    wt = jnp.transpose(params["tail"][:, :, 0, 0]).astype(jnp.float32)   # (C0, n_out) f32
    wt = jnp.pad(wt, ((0, 0), (0, _LANE - n_out)))                       # lane-dense (C0, 128)

    # Constant 2x2-mean pooling / nearest-x2 upsample matrices on flat row-major indices.
    idx = jnp.arange(S, dtype=jnp.int32)
    coarse = ((idx[:, None] // 2) * Sh + idx[None, :] // 2).reshape(HW)  # (HW,)
    onehot = coarse[:, None] == jnp.arange(HWh, dtype=jnp.int32)[None, :]
    pool_m = (onehot * 0.25).astype(jnp.bfloat16)                        # (HW, HWh)
    up_m = jnp.transpose(onehot).astype(jnp.bfloat16)                    # (HWh, HW)

    # Column-validity masks for the horizontally shifted taps (dx = 0 / dx = 2).
    col = jnp.arange(HW, dtype=jnp.int32) % S
    mask_f = jnp.stack([col != 0, col != S - 1]).astype(jnp.float32)     # (2, HW)
    colh = jnp.arange(HWh, dtype=jnp.int32) % Sh
    mask_h = jnp.stack([colh != 0, colh != Sh - 1]).astype(jnp.float32)  # (2, HWh)

    out = pl.pallas_call(
        functools.partial(_noise_regressor_kernel, S=S, Cin=Cin, C0=C0, C1=C1),
        out_shape=jax.ShapeDtypeStruct((N, 1, _LANE), jnp.float32),
        grid=(N,),
        in_specs=[
            pl.BlockSpec((None, Cin, HW), lambda n: (n, 0, 0)),          # per-image crop
            pl.BlockSpec((C0, 9 * cin_p), lambda n: (0, 0)),             # weights stay resident
            pl.BlockSpec((C1, 9 * C0), lambda n: (0, 0)),
            pl.BlockSpec((C0, 9 * (C0 + C1)), lambda n: (0, 0)),
            pl.BlockSpec((C0, _LANE), lambda n: (0, 0)),
            pl.BlockSpec((HW, HWh), lambda n: (0, 0)),
            pl.BlockSpec((HWh, HW), lambda n: (0, 0)),
            pl.BlockSpec((2, HW), lambda n: (0, 0)),
            pl.BlockSpec((2, HWh), lambda n: (0, 0)),
        ],
        out_specs=pl.BlockSpec((None, 1, _LANE), lambda n: (n, 0, 0)),
        scratch_shapes=[
            pltpu.VMEM((cin_p, lbuf), jnp.bfloat16),                     # padded input buffer
            pltpu.VMEM((C0, lbuf_h), jnp.bfloat16),                      # padded pooled e1
            pltpu.VMEM((C0 + C1, lbuf), jnp.bfloat16),                   # padded [e1, up(e2)]
        ],
        compiler_params=_COMPILER_PARAMS,
    )(x_flat, w1, w2, wd, wt, pool_m, up_m, mask_f, mask_h)
    return out.reshape(N, _LANE)[:, :n_out]


# ----------------------------------------------------------------------------
# NoiseRegressor parameters + forward
# ----------------------------------------------------------------------------
def center_crop(x_nchw, size):
    H, W = x_nchw.shape[2], x_nchw.shape[3]
    top, left = (H - size) // 2, (W - size) // 2
    return x_nchw[:, :, top:top + size, left:left + size]


def init_params(key, in_ch, channels):
    c0, c1 = channels[0], channels[1]
    ks = jax.random.split(key, 4)

    def conv_w(k, cout, cin, kh, kw):
        fan_in = cin * kh * kw
        return (jax.random.normal(k, (cout, cin, kh, kw), jnp.float32)
                / jnp.sqrt(jnp.float32(fan_in)))

    # TODO(synk): bias-free convs; the reference Unet's bias settings are unknown.
    return {
        "enc1": conv_w(ks[0], c0, in_ch, 3, 3),
        "enc2": conv_w(ks[1], c1, c0, 3, 3),
        "dec1": conv_w(ks[2], c0, c0 + c1, 3, 3),
        # tail: Conv2d(channels[0], 4, 1, 1, 0, bias=False)
        "tail": conv_w(ks[3], 4, c0, 1, 1),
    }


def noise_regressor_forward(params, x_nchw, crop_size):
    N, Cin, H, W = x_nchw.shape
    if crop_size % 2 != 0:
        raise ValueError("crop_size must be even (2x down/up-sampling in the U-Net stand-in).")
    if crop_size > H or crop_size > W:
        raise ValueError("crop_size larger than the input spatial extent.")
    # x = self.crop(x)  (torchvision CenterCrop, XLA slice)
    x = center_crop(x_nchw, crop_size)
    # Flat row-major (N, Cin, S*S) bf16: the only activation HBM traffic of the forward.
    x = x.reshape(N, Cin, crop_size * crop_size).astype(jnp.bfloat16)
    # f = self.model(x); f = self.avg(f); f = self.tail(f).squeeze(-1).squeeze(-1)
    # TODO(synk): Unet(net_type, channels) is not defined in the reference snippet; a
    # compact 2-level conv U-Net over channels[:2] stands in for it (same as before).
    f = noise_regressor_fused(x, params, crop_size)                      # (N, 4) f32
    # sigma_p, unc_p, sigma_g, unc_g = f.chunk(4, dim=1)
    sigma_p, unc_p, sigma_g, unc_g = jnp.split(f, 4, axis=1)
    return sigma_p, unc_p, sigma_g, unc_g


# ----------------------------------------------------------------------------
if __name__ == "__main__":
    key = jax.random.PRNGKey(0)
    kx, kp = jax.random.split(key)

    crop_size = 16
    channels = [16, 32, 64, 128]
    in_ch = 3

    x = jax.random.normal(kx, (2, in_ch, 24, 24), jnp.float32)           # NCHW input
    params = init_params(kp, in_ch, channels)

    fwd = jax.jit(functools.partial(noise_regressor_forward, crop_size=crop_size))
    sigma_p, unc_p, sigma_g, unc_g = fwd(params, x)
    jax.block_until_ready((sigma_p, unc_p, sigma_g, unc_g))

    for t in (sigma_p, unc_p, sigma_g, unc_g):
        assert t.shape == (2, 1), t.shape
        assert t.dtype == jnp.float32, t.dtype
    print("KERNEL_OK")
</pallas_src>

<mosaic_0001>
module attributes {stable_mosaic.version = 11 : i64} {
  func.func @_noise_regressor_kernel(%arg0: i32, %arg1: memref<1x3x256xbf16, #tpu.memory_space<vmem>>, %arg2: memref<16x72xbf16, #tpu.memory_space<vmem>>, %arg3: memref<32x144xbf16, #tpu.memory_space<vmem>>, %arg4: memref<16x432xbf16, #tpu.memory_space<vmem>>, %arg5: memref<16x128xf32, #tpu.memory_space<vmem>>, %arg6: memref<256x64xbf16, #tpu.memory_space<vmem>>, %arg7: memref<64x256xbf16, #tpu.memory_space<vmem>>, %arg8: memref<2x256xf32, #tpu.memory_space<vmem>>, %arg9: memref<2x64xf32, #tpu.memory_space<vmem>>, %arg10: memref<1x1x128xf32, #tpu.memory_space<vmem>>, %arg11: memref<8x320xbf16, #tpu.memory_space<vmem>>, %arg12: memref<16x96xbf16, #tpu.memory_space<vmem>>, %arg13: memref<48x320xbf16, #tpu.memory_space<vmem>>) attributes {dimension_semantics = [#tpu.dimension_semantics<parallel>], iteration_bounds = array<i64: 2>, scalar_prefetch = 0 : i64, scratch_operands = 3 : i64, tpu.core_type = #tpu.core_type<tc>, window_params = [{transform_indices = @transform_0, window_bounds = array<i64: 1, 3, 256>}, {pipeline_mode = #tpu.pipeline_mode<synchronous>, transform_indices = @transform_1, window_bounds = array<i64: 16, 72>}, {pipeline_mode = #tpu.pipeline_mode<synchronous>, transform_indices = @transform_2, window_bounds = array<i64: 32, 144>}, {pipeline_mode = #tpu.pipeline_mode<synchronous>, transform_indices = @transform_3, window_bounds = array<i64: 16, 432>}, {pipeline_mode = #tpu.pipeline_mode<synchronous>, transform_indices = @transform_4, window_bounds = array<i64: 16, 128>}, {pipeline_mode = #tpu.pipeline_mode<synchronous>, transform_indices = @transform_5, window_bounds = array<i64: 256, 64>}, {pipeline_mode = #tpu.pipeline_mode<synchronous>, transform_indices = @transform_6, window_bounds = array<i64: 64, 256>}, {pipeline_mode = #tpu.pipeline_mode<synchronous>, transform_indices = @transform_7, window_bounds = array<i64: 2, 256>}, {pipeline_mode = #tpu.pipeline_mode<synchronous>, transform_indices = @transform_8, window_bounds = array<i64: 2, 64>}, {transform_indices = @transform_9, window_bounds = array<i64: 1, 1, 128>}]} {
    %c0 = arith.constant 0 : index
    %c0_0 = arith.constant 0 : index
    %0 = vector.load %arg8[%c0, %c0_0] : memref<2x256xf32, #tpu.memory_space<vmem>>, vector<2x256xf32>
    %1 = vector.extract_strided_slice %0 {offsets = [0, 0], sizes = [1, 256], strides = [1, 1]} : vector<2x256xf32> to vector<1x256xf32>
    %cst = arith.constant 5.000000e-01 : f32
    %2 = vector.broadcast %cst : f32 to vector<1x256xf32>
    %3 = arith.cmpf ogt, %1, %2 : vector<1x256xf32>
    %4 = vector.extract_strided_slice %0 {offsets = [1, 0], sizes = [1, 256], strides = [1, 1]} : vector<2x256xf32> to vector<1x256xf32>
    %cst_1 = arith.constant 5.000000e-01 : f32
    %5 = vector.broadcast %cst_1 : f32 to vector<1x256xf32>
    %6 = arith.cmpf ogt, %4, %5 : vector<1x256xf32>
    %c0_2 = arith.constant 0 : index
    %c0_3 = arith.constant 0 : index
    %7 = vector.load %arg9[%c0_2, %c0_3] : memref<2x64xf32, #tpu.memory_space<vmem>>, vector<2x64xf32>
    %8 = vector.extract_strided_slice %7 {offsets = [0, 0], sizes = [1, 64], strides = [1, 1]} : vector<2x64xf32> to vector<1x64xf32>
    %cst_4 = arith.constant 5.000000e-01 : f32
    %9 = vector.broadcast %cst_4 : f32 to vector<1x64xf32>
    %10 = arith.cmpf ogt, %8, %9 : vector<1x64xf32>
    %11 = vector.extract_strided_slice %7 {offsets = [1, 0], sizes = [1, 64], strides = [1, 1]} : vector<2x64xf32> to vector<1x64xf32>
    %cst_5 = arith.constant 5.000000e-01 : f32
    %12 = vector.broadcast %cst_5 : f32 to vector<1x64xf32>
    %13 = arith.cmpf ogt, %11, %12 : vector<1x64xf32>
    %cst_6 = arith.constant 0.000000e+00 : bf16
    %14 = vector.broadcast %cst_6 : bf16 to vector<8x320xbf16>
    %c0_7 = arith.constant 0 : index
    %c0_8 = arith.constant 0 : index
    %15 = vector.load %arg11[%c0_7, %c0_8] : memref<8x320xbf16, #tpu.memory_space<vmem>>, vector<8x320xbf16>
    tpu.vector_store %arg11[%c0_7, %c0_8], %14 {strides = array<i32>} : memref<8x320xbf16, #tpu.memory_space<vmem>>, vector<8x320xbf16>,
    %c0_9 = arith.constant 0 : index
    %c0_10 = arith.constant 0 : index
    %c0_11 = arith.constant 0 : index
    %16 = vector.load %arg1[%c0_9, %c0_10, %c0_11] : memref<1x3x256xbf16, #tpu.memory_space<vmem>>, vector<1x3x256xbf16>
    %17 = vector.shape_cast %16 : vector<1x3x256xbf16> to vector<3x256xbf16>
    %c0_12 = arith.constant 0 : index
    %c17 = arith.constant 17 : index
    %18 = vector.load %arg11[%c0_12, %c17] : memref<8x320xbf16, #tpu.memory_space<vmem>>, vector<3x256xbf16>
    tpu.vector_store %arg11[%c0_12, %c17], %17 {strides = array<i32>} : memref<8x320xbf16, #tpu.memory_space<vmem>>, vector<3x256xbf16>,
    %c0_13 = arith.constant 0 : index
    %c0_14 = arith.constant 0 : index
    %19 = vector.load %arg11[%c0_13, %c0_14] : memref<8x320xbf16, #tpu.memory_space<vmem>>, vector<8x256xbf16>
    %c0_i32 = arith.constant 0 : i32
    %20 = arith.sitofp %c0_i32 : i32 to bf16
    %21 = vector.shape_cast %3 : vector<1x256xi1> to vector<1x256xi1>
    %22 = vector.broadcast %21 : vector<1x256xi1> to vector<8x256xi1>
    %23 = vector.broadcast %20 : bf16 to vector<8x256xbf16>
    %24 = arith.select %22, %19, %23 : vector<8x256xi1>, vector<8x256xbf16>
    %c0_15 = arith.constant 0 : index
    %c1 = arith.constant 1 : index
    %25 = vector.load %arg11[%c0_15, %c1] : memref<8x320xbf16, #tpu.memory_space<vmem>>, vector<8x256xbf16>
    %c0_16 = arith.constant 0 : index
    %c2 = arith.constant 2 : index
    %26 = vector.load %arg11[%c0_16, %c2] : memref<8x320xbf16, #tpu.memory_space<vmem>>, vector<8x256xbf16>
    %c0_i32_17 = arith.constant 0 : i32
    %27 = arith.sitofp %c0_i32_17 : i32 to bf16
    %28 = vector.shape_cast %6 : vector<1x256xi1> to vector<1x256xi1>
    %29 = vector.broadcast %28 : vector<1x256xi1> to vector<8x256xi1>
    %30 = vector.broadcast %27 : bf16 to vector<8x256xbf16>
    %31 = arith.select %29, %26, %30 : vector<8x256xi1>, vector<8x256xbf16>
    %c0_18 = arith.constant 0 : index
    %c16 = arith.constant 16 : index
    %32 = vector.load %arg11[%c0_18, %c16] : memref<8x320xbf16, #tpu.memory_space<vmem>>, vector<8x256xbf16>
    %c0_i32_19 = arith.constant 0 : i32
    %33 = arith.sitofp %c0_i32_19 : i32 to bf16
    %34 = vector.shape_cast %3 : vector<1x256xi1> to vector<1x256xi1>
    %35 = vector.broadcast %34 : vector<1x256xi1> to vector<8x256xi1>
    %36 = vector.broadcast %33 : bf16 to vector<8x256xbf16>
    %37 = arith.select %35, %32, %36 : vector<8x256xi1>, vector<8x256xbf16>
    %c0_20 = arith.constant 0 : index
    %c17_21 = arith.constant 17 : index
    %38 = vector.load %arg11[%c0_20, %c17_21] : memref<8x320xbf16, #tpu.memory_space<vmem>>, vector<8x256xbf16>
    %c0_22 = arith.constant 0 : index
    %c18 = arith.constant 18 : index
    %39 = vector.load %arg11[%c0_22, %c18] : memref<8x320xbf16, #tpu.memory_space<vmem>>, vector<8x256xbf16>
    %c0_i32_23 = arith.constant 0 : i32
    %40 = arith.sitofp %c0_i32_23 : i32 to bf16
    %41 = vector.shape_cast %6 : vector<1x256xi1> to vector<1x256xi1>
    %42 = vector.broadcast %41 : vector<1x256xi1> to vector<8x256xi1>
    %43 = vector.broadcast %40 : bf16 to vector<8x256xbf16>
    %44 = arith.select %42, %39, %43 : vector<8x256xi1>, vector<8x256xbf16>
    %c0_24 = arith.constant 0 : index
    %c32 = arith.constant 32 : index
    %45 = vector.load %arg11[%c0_24, %c32] : memref<8x320xbf16, #tpu.memory_space<vmem>>, vector<8x256xbf16>
    %c0_i32_25 = arith.constant 0 : i32
    %46 = arith.sitofp %c0_i32_25 : i32 to bf16
    %47 = vector.shape_cast %3 : vector<1x256xi1> to vector<1x256xi1>
    %48 = vector.broadcast %47 : vector<1x256xi1> to vector<8x256xi1>
    %49 = vector.broadcast %46 : bf16 to vector<8x256xbf16>
    %50 = arith.select %48, %45, %49 : vector<8x256xi1>, vector<8x256xbf16>
    %c0_26 = arith.constant 0 : index
    %c33 = arith.constant 33 : index
    %51 = vector.load %arg11[%c0_26, %c33] : memref<8x320xbf16, #tpu.memory_space<vmem>>, vector<8x256xbf16>
    %c0_27 = arith.constant 0 : index
    %c34 = arith.constant 34 : index
    %52 = vector.load %arg11[%c0_27, %c34] : memref<8x320xbf16, #tpu.memory_space<vmem>>, vector<8x256xbf16>
    %c0_i32_28 = arith.constant 0 : i32
    %53 = arith.sitofp %c0_i32_28 : i32 to bf16
    %54 = vector.shape_cast %6 : vector<1x256xi1> to vector<1x256xi1>
    %55 = vector.broadcast %54 : vector<1x256xi1> to vector<8x256xi1>
    %56 = vector.broadcast %53 : bf16 to vector<8x256xbf16>
    %57 = arith.select %55, %52, %56 : vector<8x256xi1>, vector<8x256xbf16>
    %58 = tpu.concatenate %24, %25, %31, %37, %38, %44, %50, %51, %57 in 0 : vector<8x256xbf16>, vector<8x256xbf16>, vector<8x256xbf16>, vector<8x256xbf16>, vector<8x256xbf16>, vector<8x256xbf16>, vector<8x256xbf16>, vector<8x256xbf16>, vector<8x256xbf16> -> vector<72x256xbf16>
    %c0_29 = arith.constant 0 : index
    %c0_30 = arith.constant 0 : index
    %59 = vector.load %arg2[%c0_29, %c0_30] : memref<16x72xbf16, #tpu.memory_space<vmem>>, vector<16x72xbf16>
    %cst_31 = arith.constant dense<0.000000e+00> : vector<16x256xf32>
    %60 = tpu.matmul %59, %58, %cst_31 {dimension_numbers = #tpu.dot_dimension_numbers<[1], [0], [0], [1], [0, 0, 1, 1], [], []>} : vector<16x72xbf16>, vector<72x256xbf16>, vector<16x256xf32> -> vector<16x256xf32>
    %cst_32 = arith.constant 0.000000e+00 : f32
    %61 = vector.broadcast %cst_32 : f32 to vector<16x256xf32>
    %62 = arith.maximumf %60, %61 : vector<16x256xf32>
    %63 = arith.truncf %62 : vector<16x256xf32> to vector<16x256xbf16>
    %c0_33 = arith.constant 0 : index
    %c0_34 = arith.constant 0 : index
    %64 = vector.load %arg6[%c0_33, %c0_34] : memref<256x64xbf16, #tpu.memory_space<vmem>>, vector<256x64xbf16>
    %cst_35 = arith.constant dense<0.000000e+00> : vector<16x64xf32>
    %65 = tpu.matmul %63, %64, %cst_35 {dimension_numbers = #tpu.dot_dimension_numbers<[1], [0], [0], [1], [0, 0, 1, 1], [], []>} : vector<16x256xbf16>, vector<256x64xbf16>, vector<16x64xf32> -> vector<16x64xf32>
    %cst_36 = arith.constant 0.000000e+00 : bf16
    %66 = vector.broadcast %cst_36 : bf16 to vector<16x96xbf16>
    %c0_37 = arith.constant 0 : index
    %c0_38 = arith.constant 0 : index
    %67 = vector.load %arg12[%c0_37, %c0_38] : memref<16x96xbf16, #tpu.memory_space<vmem>>, vector<16x96xbf16>
    tpu.vector_store %arg12[%c0_37, %c0_38], %66 {strides = array<i32>} : memref<16x96xbf16, #tpu.memory_space<vmem>>, vector<16x96xbf16>,
    %68 = arith.truncf %65 : vector<16x64xf32> to vector<16x64xbf16>
    %c0_39 = arith.constant 0 : index
    %c9 = arith.constant 9 : index
    %69 = vector.load %arg12[%c0_39, %c9] : memref<16x96xbf16, #tpu.memory_space<vmem>>, vector<16x64xbf16>
    tpu.vector_store %arg12[%c0_39, %c9], %68 {strides = array<i32>} : memref<16x96xbf16, #tpu.memory_space<vmem>>, vector<16x64xbf16>,
    %c0_40 = arith.constant 0 : index
    %c0_41 = arith.constant 0 : index
    %70 = vector.load %arg12[%c0_40, %c0_41] : memref<16x96xbf16, #tpu.memory_space<vmem>>, vector<16x64xbf16>
    %c0_i32_42 = arith.constant 0 : i32
    %71 = arith.sitofp %c0_i32_42 : i32 to bf16
    %72 = vector.shape_cast %10 : vector<1x64xi1> to vector<1x64xi1>
    %73 = vector.broadcast %72 : vector<1x64xi1> to vector<16x64xi1>
    %74 = vector.broadcast %71 : bf16 to vector<16x64xbf16>
    %75 = arith.select %73, %70, %74 : vector<16x64xi1>, vector<16x64xbf16>
    %c0_43 = arith.constant 0 : index
    %c1_44 = arith.constant 1 : index
    %76 = vector.load %arg12[%c0_43, %c1_44] : memref<16x96xbf16, #tpu.memory_space<vmem>>, vector<16x64xbf16>
    %c0_45 = arith.constant 0 : index
    %c2_46 = arith.constant 2 : index
    %77 = vector.load %arg12[%c0_45, %c2_46] : memref<16x96xbf16, #tpu.memory_space<vmem>>, vector<16x64xbf16>
    %c0_i32_47 = arith.constant 0 : i32
    %78 = arith.sitofp %c0_i32_47 : i32 to bf16
    %79 = vector.shape_cast %13 : vector<1x64xi1> to vector<1x64xi1>
    %80 = vector.broadcast %79 : vector<1x64xi1> to vector<16x64xi1>
    %81 = vector.broadcast %78 : bf16 to vector<16x64xbf16>
    %82 = arith.select %80, %77, %81 : vector<16x64xi1>, vector<16x64xbf16>
    %c0_48 = arith.constant 0 : index
    %c8 = arith.constant 8 : index
    %83 = vector.load %arg12[%c0_48, %c8] : memref<16x96xbf16, #tpu.memory_space<vmem>>, vector<16x64xbf16>
    %c0_i32_49 = arith.constant 0 : i32
    %84 = arith.sitofp %c0_i32_49 : i32 to bf16
    %85 = vector.shape_cast %10 : vector<1x64xi1> to vector<1x64xi1>
    %86 = vector.broadcast %85 : vector<1x64xi1> to vector<16x64xi1>
    %87 = vector.broadcast %84 : bf16 to vector<16x64xbf16>
    %88 = arith.select %86, %83, %87 : vector<16x64xi1>, vector<16x64xbf16>
    %c0_50 = arith.constant 0 : index
    %c9_51 = arith.constant 9 : index
    %89 = vector.load %arg12[%c0_50, %c9_51] : memref<16x96xbf16, #tpu.memory_space<vmem>>, vector<16x64xbf16>
    %c0_52 = arith.constant 0 : index
    %c10 = arith.constant 10 : index
    %90 = vector.load %arg12[%c0_52, %c10] : memref<16x96xbf16, #tpu.memory_space<vmem>>, vector<16x64xbf16>
    %c0_i32_53 = arith.constant 0 : i32
    %91 = arith.sitofp %c0_i32_53 : i32 to bf16
    %92 = vector.shape_cast %13 : vector<1x64xi1> to vector<1x64xi1>
    %93 = vector.broadcast %92 : vector<1x64xi1> to vector<16x64xi1>
    %94 = vector.broadcast %91 : bf16 to vector<16x64xbf16>
    %95 = arith.select %93, %90, %94 : vector<16x64xi1>, vector<16x64xbf16>
    %c0_54 = arith.constant 0 : index
    %c16_55 = arith.constant 16 : index
    %96 = vector.load %arg12[%c0_54, %c16_55] : memref<16x96xbf16, #tpu.memory_space<vmem>>, vector<16x64xbf16>
    %c0_i32_56 = arith.constant 0 : i32
    %97 = arith.sitofp %c0_i32_56 : i32 to bf16
    %98 = vector.shape_cast %10 : vector<1x64xi1> to vector<1x64xi1>
    %99 = vector.broadcast %98 : vector<1x64xi1> to vector<16x64xi1>
    %100 = vector.broadcast %97 : bf16 to vector<16x64xbf16>
    %101 = arith.select %99, %96, %100 : vector<16x64xi1>, vector<16x64xbf16>
    %c0_57 = arith.constant 0 : index
    %c17_58 = arith.constant 17 : index
    %102 = vector.load %arg12[%c0_57, %c17_58] : memref<16x96xbf16, #tpu.memory_space<vmem>>, vector<16x64xbf16>
    %c0_59 = arith.constant 0 : index
    %c18_60 = arith.constant 18 : index
    %103 = vector.load %arg12[%c0_59, %c18_60] : memref<16x96xbf16, #tpu.memory_space<vmem>>, vector<16x64xbf16>
    %c0_i32_61 = arith.constant 0 : i32
    %104 = arith.sitofp %c0_i32_61 : i32 to bf16
    %105 = vector.shape_cast %13 : vector<1x64xi1> to vector<1x64xi1>
    %106 = vector.broadcast %105 : vector<1x64xi1> to vector<16x64xi1>
    %107 = vector.broadcast %104 : bf16 to vector<16x64xbf16>
    %108 = arith.select %106, %103, %107 : vector<16x64xi1>, vector<16x64xbf16>
    %109 = tpu.concatenate %75, %76, %82, %88, %89, %95, %101, %102, %108 in 0 : vector<16x64xbf16>, vector<16x64xbf16>, vector<16x64xbf16>, vector<16x64xbf16>, vector<16x64xbf16>, vector<16x64xbf16>, vector<16x64xbf16>, vector<16x64xbf16>, vector<16x64xbf16> -> vector<144x64xbf16>
    %c0_62 = arith.constant 0 : index
    %c0_63 = arith.constant 0 : index
    %110 = vector.load %arg3[%c0_62, %c0_63] : memref<32x144xbf16, #tpu.memory_space<vmem>>, vector<32x144xbf16>
    %cst_64 = arith.constant dense<0.000000e+00> : vector<32x64xf32>
    %111 = tpu.matmul %110, %109, %cst_64 {dimension_numbers = #tpu.dot_dimension_numbers<[1], [0], [0], [1], [0, 0, 1, 1], [], []>} : vector<32x144xbf16>, vector<144x64xbf16>, vector<32x64xf32> -> vector<32x64xf32>
    %cst_65 = arith.constant 0.000000e+00 : f32
    %112 = vector.broadcast %cst_65 : f32 to vector<32x64xf32>
    %113 = arith.maximumf %111, %112 : vector<32x64xf32>
    %114 = arith.truncf %113 : vector<32x64xf32> to vector<32x64xbf16>
    %c0_66 = arith.constant 0 : index
    %c0_67 = arith.constant 0 : index
    %115 = vector.load %arg7[%c0_66, %c0_67] : memref<64x256xbf16, #tpu.memory_space<vmem>>, vector<64x256xbf16>
    %cst_68 = arith.constant dense<0.000000e+00> : vector<32x256xf32>
    %116 = tpu.matmul %114, %115, %cst_68 {dimension_numbers = #tpu.dot_dimension_numbers<[1], [0], [0], [1], [0, 0, 1, 1], [], []>} : vector<32x64xbf16>, vector<64x256xbf16>, vector<32x256xf32> -> vector<32x256xf32>
    %cst_69 = arith.constant 0.000000e+00 : bf16
    %117 = vector.broadcast %cst_69 : bf16 to vector<48x320xbf16>
    %c0_70 = arith.constant 0 : index
    %c0_71 = arith.constant 0 : index
    %118 = vector.load %arg13[%c0_70, %c0_71] : memref<48x320xbf16, #tpu.memory_space<vmem>>, vector<48x320xbf16>
    tpu.vector_store %arg13[%c0_70, %c0_71], %117 {strides = array<i32>} : memref<48x320xbf16, #tpu.memory_space<vmem>>, vector<48x320xbf16>,
    %c0_72 = arith.constant 0 : index
    %c17_73 = arith.constant 17 : index
    %119 = vector.load %arg13[%c0_72, %c17_73] : memref<48x320xbf16, #tpu.memory_space<vmem>>, vector<16x256xbf16>
    tpu.vector_store %arg13[%c0_72, %c17_73], %63 {strides = array<i32>} : memref<48x320xbf16, #tpu.memory_space<vmem>>, vector<16x256xbf16>,
    %120 = arith.truncf %116 : vector<32x256xf32> to vector<32x256xbf16>
    %c16_74 = arith.constant 16 : index
    %c17_75 = arith.constant 17 : index
    %121 = vector.load %arg13[%c16_74, %c17_75] : memref<48x320xbf16, #tpu.memory_space<vmem>>, vector<32x256xbf16>
    tpu.vector_store %arg13[%c16_74, %c17_75], %120 {strides = array<i32>} : memref<48x320xbf16, #tpu.memory_space<vmem>>, vector<32x256xbf16>,
    %c0_76 = arith.constant 0 : index
    %c0_77 = arith.constant 0 : index
    %122 = vector.load %arg13[%c0_76, %c0_77] : memref<48x320xbf16, #tpu.memory_space<vmem>>, vector<48x256xbf16>
    %c0_i32_78 = arith.constant 0 : i32
    %123 = arith.sitofp %c0_i32_78 : i32 to bf16
    %124 = vector.shape_cast %3 : vector<1x256xi1> to vector<1x256xi1>
    %125 = vector.broadcast %124 : vector<1x256xi1> to vector<48x256xi1>
    %126 = vector.broadcast %123 : bf16 to vector<48x256xbf16>
    %127 = arith.select %125, %122, %126 : vector<48x256xi1>, vector<48x256xbf16>
    %c0_79 = arith.constant 0 : index
    %c1_80 = arith.constant 1 : index
    %128 = vector.load %arg13[%c0_79, %c1_80] : memref<48x320xbf16, #tpu.memory_space<vmem>>, vector<48x256xbf16>
    %c0_81 = arith.constant 0 : index
    %c2_82 = arith.constant 2 : index
    %129 = vector.load %arg13[%c0_81, %c2_82] : memref<48x320xbf16, #tpu.memory_space<vmem>>, vector<48x256xbf16>
    %c0_i32_83 = arith.constant 0 : i32
    %130 = arith.sitofp %c0_i32_83 : i32 to bf16
    %131 = vector.shape_cast %6 : vector<1x256xi1> to vector<1x256xi1>
    %132 = vector.broadcast %131 : vector<1x256xi1> to vector<48x256xi1>
    %133 = vector.broadcast %130 : bf16 to vector<48x256xbf16>
    %134 = arith.select %132, %129, %133 : vector<48x256xi1>, vector<48x256xbf16>
    %c0_84 = arith.constant 0 : index
    %c16_85 = arith.constant 16 : index
    %135 = vector.load %arg13[%c0_84, %c16_85] : memref<48x320xbf16, #tpu.memory_space<vmem>>, vector<48x256xbf16>
    %c0_i32_86 = arith.constant 0 : i32
    %136 = arith.sitofp %c0_i32_86 : i32 to bf16
    %137 = vector.shape_cast %3 : vector<1x256xi1> to vector<1x256xi1>
    %138 = vector.broadcast %137 : vector<1x256xi1> to vector<48x256xi1>
    %139 = vector.broadcast %136 : bf16 to vector<48x256xbf16>
    %140 = arith.select %138, %135, %139 : vector<48x256xi1>, vector<48x256xbf16>
    %c0_87 = arith.constant 0 : index
    %c17_88 = arith.constant 17 : index
    %141 = vector.load %arg13[%c0_87, %c17_88] : memref<48x320xbf16, #tpu.memory_space<vmem>>, vector<48x256xbf16>
    %c0_89 = arith.constant 0 : index
    %c18_90 = arith.constant 18 : index
    %142 = vector.load %arg13[%c0_89, %c18_90] : memref<48x320xbf16, #tpu.memory_space<vmem>>, vector<48x256xbf16>
    %c0_i32_91 = arith.constant 0 : i32
    %143 = arith.sitofp %c0_i32_91 : i32 to bf16
    %144 = vector.shape_cast %6 : vector<1x256xi1> to vector<1x256xi1>
    %145 = vector.broadcast %144 : vector<1x256xi1> to vector<48x256xi1>
    %146 = vector.broadcast %143 : bf16 to vector<48x256xbf16>
    %147 = arith.select %145, %142, %146 : vector<48x256xi1>, vector<48x256xbf16>
    %c0_92 = arith.constant 0 : index
    %c32_93 = arith.constant 32 : index
    %148 = vector.load %arg13[%c0_92, %c32_93] : memref<48x320xbf16, #tpu.memory_space<vmem>>, vector<48x256xbf16>
    %c0_i32_94 = arith.constant 0 : i32
    %149 = arith.sitofp %c0_i32_94 : i32 to bf16
    %150 = vector.shape_cast %3 : vector<1x256xi1> to vector<1x256xi1>
    %151 = vector.broadcast %150 : vector<1x256xi1> to vector<48x256xi1>
    %152 = vector.broadcast %149 : bf16 to vector<48x256xbf16>
    %153 = arith.select %151, %148, %152 : vector<48x256xi1>, vector<48x256xbf16>
    %c0_95 = arith.constant 0 : index
    %c33_96 = arith.constant 33 : index
    %154 = vector.load %arg13[%c0_95, %c33_96] : memref<48x320xbf16, #tpu.memory_space<vmem>>, vector<48x256xbf16>
    %c0_97 = arith.constant 0 : index
    %c34_98 = arith.constant 34 : index
    %155 = vector.load %arg13[%c0_97, %c34_98] : memref<48x320xbf16, #tpu.memory_space<vmem>>, vector<48x256xbf16>
    %c0_i32_99 = arith.constant 0 : i32
    %156 = arith.sitofp %c0_i32_99 : i32 to bf16
    %157 = vector.shape_cast %6 : vector<1x256xi1> to vector<1x256xi1>
    %158 = vector.broadcast %157 : vector<1x256xi1> to vector<48x256xi1>
    %159 = vector.broadcast %156 : bf16 to vector<48x256xbf16>
    %160 = arith.select %158, %155, %159 : vector<48x256xi1>, vector<48x256xbf16>
    %161 = tpu.concatenate %127, %128, %134, %140, %141, %147, %153, %154, %160 in 0 : vector<48x256xbf16>, vector<48x256xbf16>, vector<48x256xbf16>, vector<48x256xbf16>, vector<48x256xbf16>, vector<48x256xbf16>, vector<48x256xbf16>, vector<48x256xbf16>, vector<48x256xbf16> -> vector<432x256xbf16>
    %c0_100 = arith.constant 0 : index
    %c0_101 = arith.constant 0 : index
    %162 = vector.load %arg4[%c0_100, %c0_101] : memref<16x432xbf16, #tpu.memory_space<vmem>>, vector<16x432xbf16>
    %cst_102 = arith.constant dense<0.000000e+00> : vector<16x256xf32>
    %163 = tpu.matmul %162, %161, %cst_102 {dimension_numbers = #tpu.dot_dimension_numbers<[1], [0], [0], [1], [0, 0, 1, 1], [], []>} : vector<16x432xbf16>, vector<432x256xbf16>, vector<16x256xf32> -> vector<16x256xf32>
    %cst_103 = arith.constant 0.000000e+00 : f32
    %164 = vector.broadcast %cst_103 : f32 to vector<16x256xf32>
    %165 = arith.maximumf %163, %164 : vector<16x256xf32>
    %cst_104 = arith.constant dense<0.000000e+00> : vector<16xf32>
    %166 = vector.multi_reduction <add>, %165, %cst_104 [1] : vector<16x256xf32> to vector<16xf32>
    %167 = vector.shape_cast %166 : vector<16xf32> to vector<16x1xf32>
    %cst_105 = arith.constant 2.560000e+02 : f32
    %168 = vector.broadcast %cst_105 : f32 to vector<16x1xf32>
    %169 = arith.divf %167, %168 : vector<16x1xf32>
    %c0_106 = arith.constant 0 : index
    %c0_107 = arith.constant 0 : index
    %170 = vector.load %arg5[%c0_106, %c0_107] : memref<16x128xf32, #tpu.memory_space<vmem>>, vector<16x128xf32>
    %171 = vector.broadcast %169 : vector<16x1xf32> to vector<16x128xf32>
    %172 = arith.mulf %170, %171 : vector<16x128xf32>
    %cst_108 = arith.constant dense<0.000000e+00> : vector<128xf32>
    %173 = vector.multi_reduction <add>, %172, %cst_108 [0] : vector<16x128xf32> to vector<128xf32>
    %174 = vector.shape_cast %173 : vector<128xf32> to vector<1x128xf32>
    %c0_109 = arith.constant 0 : index
    %c0_110 = arith.constant 0 : index
    %c0_111 = arith.constant 0 : index
    %175 = vector.load %arg10[%c0_109, %c0_110, %c0_111] : memref<1x1x128xf32, #tpu.memory_space<vmem>>, vector<1x1x128xf32>
    %176 = vector.shape_cast %175 : vector<1x1x128xf32> to vector<1x128xf32>
    %177 = vector.shape_cast %174 : vector<1x128xf32> to vector<1x1x128xf32>
    tpu.vector_store %arg10[%c0_109, %c0_110, %c0_111], %177 {strides = array<i32>} : memref<1x1x128xf32, #tpu.memory_space<vmem>>, vector<1x1x128xf32>,
    return
  }
  func.func @transform_0(%arg0: i32) -> (i32, i32, i32) {
    %c0_i32 = arith.constant 0 : i32
    %c0_i32_0 = arith.constant 0 : i32
    %c0_i32_1 = arith.constant 0 : i32
    return %arg0, %c0_i32, %c0_i32_0 : i32, i32, i32
  }
  func.func @transform_1(%arg0: i32) -> (i32, i32) {
    %c0_i32 = arith.constant 0 : i32
    %c0_i32_0 = arith.constant 0 : i32
    %c0_i32_1 = arith.constant 0 : i32
    return %c0_i32, %c0_i32_0 : i32, i32
  }
  func.func @transform_2(%arg0: i32) -> (i32, i32) {
    %c0_i32 = arith.constant 0 : i32
    %c0_i32_0 = arith.constant 0 : i32
    %c0_i32_1 = arith.constant 0 : i32
    return %c0_i32, %c0_i32_0 : i32, i32
  }
  func.func @transform_3(%arg0: i32) -> (i32, i32) {
    %c0_i32 = arith.constant 0 : i32
    %c0_i32_0 = arith.constant 0 : i32
    %c0_i32_1 = arith.constant 0 : i32
    return %c0_i32, %c0_i32_0 : i32, i32
  }
  func.func @transform_4(%arg0: i32) -> (i32, i32) {
    %c0_i32 = arith.constant 0 : i32
    %c0_i32_0 = arith.constant 0 : i32
    %c0_i32_1 = arith.constant 0 : i32
    return %c0_i32, %c0_i32_0 : i32, i32
  }
  func.func @transform_5(%arg0: i32) -> (i32, i32) {
    %c0_i32 = arith.constant 0 : i32
    %c0_i32_0 = arith.constant 0 : i32
    %c0_i32_1 = arith.constant 0 : i32
    return %c0_i32, %c0_i32_0 : i32, i32
  }
  func.func @transform_6(%arg0: i32) -> (i32, i32) {
    %c0_i32 = arith.constant 0 : i32
    %c0_i32_0 = arith.constant 0 : i32
    %c0_i32_1 = arith.constant 0 : i32
    return %c0_i32, %c0_i32_0 : i32, i32
  }
  func.func @transform_7(%arg0: i32) -> (i32, i32) {
    %c0_i32 = arith.constant 0 : i32
    %c0_i32_0 = arith.constant 0 : i32
    %c0_i32_1 = arith.constant 0 : i32
    return %c0_i32, %c0_i32_0 : i32, i32
  }
  func.func @transform_8(%arg0: i32) -> (i32, i32) {
    %c0_i32 = arith.constant 0 : i32
    %c0_i32_0 = arith.constant 0 : i32
    %c0_i32_1 = arith.constant 0 : i32
    return %c0_i32, %c0_i32_0 : i32, i32
  }
  func.func @transform_9(%arg0: i32) -> (i32, i32, i32) {
    %c0_i32 = arith.constant 0 : i32
    %c0_i32_0 = arith.constant 0 : i32
    %c0_i32_1 = arith.constant 0 : i32
    return %arg0, %c0_i32, %c0_i32_0 : i32, i32, i32
  }
}

</mosaic_0001>

<llo_original>
// kernel: noise_regressor_forward.1
$region0: #{noise_regressor_forward.1}
  #allocation0 [shape = 'u32[]', space=smem, size = 0x4, offset = 0x4, fixed_abs, tag = 'smem constant byte address 0x4 - core index']
  #allocation1 [shape = 'u32[144,128]{1,0:T(1,128)}', space=vmem, size = 0x12000, scoped, tag = 'internal scratch']
  #allocation2 [shape = 'bf16[8,320]{1,0:T(8,128)(2,1)}', space=vmem, size = 0x1800, scoped, tag = 'scratch operand']
  #allocation3 [shape = 'bf16[16,96]{1,0:T(16,128)(2,1)}', space=vmem, size = 0x1000, scoped, tag = 'scratch operand']
  #allocation4 [shape = 'bf16[48,320]{1,0:T(16,128)(2,1)}', space=vmem, size = 0x9000, scoped, tag = 'scratch operand']
  %s0 = inlined_call_operand.vmem [shape: bf16[2,3,256], index: 0, kind: input, shape index: {}]
  %s1 = inlined_call_operand.vmem [shape: bf16[16,72], index: 1, kind: input, shape index: {}]
  %s2 = inlined_call_operand.vmem [shape: bf16[32,144], index: 2, kind: input, shape index: {}]
  %s3 = inlined_call_operand.vmem [shape: bf16[16,432], index: 3, kind: input, shape index: {}]
  %s4 = inlined_call_operand.vmem [shape: f32[16,128], index: 4, kind: input, shape index: {}]
  %s5 = inlined_call_operand.vmem [shape: bf16[256,64], index: 5, kind: input, shape index: {}]
  %s6 = inlined_call_operand.vmem [shape: bf16[64,256], index: 6, kind: input, shape index: {}]
  %s7 = inlined_call_operand.vmem [shape: f32[2,256], index: 7, kind: input, shape index: {}]
  %s8 = inlined_call_operand.vmem [shape: f32[2,64], index: 8, kind: input, shape index: {}]
  %s9 = inlined_call_operand.vmem [shape: f32[2,1,128], index: 9, kind: output, shape index: {}]
  %s10 = sld [smem:[#allocation0]]
  $region69: #{noise_regressor_forward.1} parent=0
    _
  %s12 = ssub.s32 1, %s10
  %s13 = scalar_select 0, %s12, %s10
  loop: start=0, step=1, limit=4
  $region2: #{noise_regressor_forward.1} parent=0 // loop_pre_header
    _
  $region3: #{noise_regressor_forward.1} parent=0 // loop_header
    %s15 = sphi 0, %s19
    %p16 = scmp.ge.s32.totalorder %s15, 4
    %s25 = sphi 0, %s27
    %s28 = sphi 0, %s25
    %s29 = sphi 0, %s28
    %s45 = sphi 0, %s29
    %s49 = sphi 0, %s49
    %s51 = sphi 0, %s49
    %s52 = sphi 0, %s51
    %s66 = sphi 0, %s52
    %s70 = sphi 0, %s70
    %s72 = sphi 0, %s70
    %s73 = sphi 0, %s72
    %s87 = sphi 0, %s73
    %s91 = sphi 0, %s91
    %s93 = sphi 0, %s91
    %s94 = sphi 0, %s93
    %s108 = sphi 0, %s94
    %s112 = sphi 0, %s112
    %s114 = sphi 0, %s112
    %s115 = sphi 0, %s114
    %s129 = sphi 0, %s115
    %s133 = sphi 0, %s133
    %s135 = sphi 0, %s133
    %s136 = sphi 0, %s135
    %s150 = sphi 0, %s136
    %s154 = sphi 0, %s154
    %s156 = sphi 0, %s154
    %s157 = sphi 0, %s156
    %s171 = sphi 0, %s157
    %s175 = sphi 0, %s175
    %s177 = sphi 0, %s175
    %s178 = sphi 0, %s177
    %s192 = sphi 0, %s178
    %s196 = sphi 0, %s196
    %s198 = sphi 0, %s196
    %s199 = sphi 0, %s198
    %s213 = sphi 0, %s199
    %s219 = sphi 0, %s221
    %s222 = sphi 0, %s219
    %s223 = sphi 0, %s222
    %s239 = sphi 0, %s223
  $region4: #{noise_regressor_forward.1} parent=0 // loop_header_branch
    %18 = sbr.rel (%p16) target = $region8
  $region5: #{noise_regressor_forward.1} parent=0 // loop_body
    %s20 = ssub.s32 %s15, 1
    %s21 = ssub.s32 %s15, 2
    %s22 = sadd.s32 %s15, 1
    %s23 = ssub.s32 %s15, %s22
    %p24 = scmp.eq.s32.totalorder %s23, 0
    %s26 = sadd.s32 %s25, 1
    %s27 = scalar_select %p24, %s25, %s26
    %p30 = pneg %p24
    %p31 = scmp.eq.s32.totalorder %s15, 1
    %p32 = por %p30, %p31
    %p33 = scmp.ne.s32.totalorder %s25, %s28
    %p34 = scmp.eq.s32.totalorder %s15, 0
    %p35 = por %p33, %p34
    %p36 = scmp.ne.s32.totalorder %s25, %s28
    %p37 = scmp.eq.s32.totalorder %s20, 1
    %p38 = por %p36, %p37
    %p39 = scmp.ne.s32.totalorder %s28, %s29
    %p40 = scmp.eq.s32.totalorder %s20, 0
    %p41 = por %p39, %p40
    %p42 = scmp.ne.s32.totalorder %s28, %s29
    %p43 = scmp.eq.s32.totalorder %s21, 1
    %p44 = por %p42, %p43
    %p46 = scmp.ne.s32.totalorder %s29, %s45
    %p47 = scmp.eq.s32.totalorder %s21, 0
    %p48 = por %p46, %p47
    %s50 = sadd.s32 %s49, 1
    %p53 = scmp.eq.s32.totalorder %s15, 1
    %p54 = scmp.ne.s32.totalorder %s49, %s51
    %p55 = scmp.eq.s32.totalorder %s15, 0
    %p56 = por %p54, %p55
    %p57 = scmp.ne.s32.totalorder %s49, %s51
    %p58 = scmp.eq.s32.totalorder %s20, 1
    %p59 = por %p57, %p58
    %p60 = scmp.ne.s32.totalorder %s51, %s52
    %p61 = scmp.eq.s32.totalorder %s20, 0
    %p62 = por %p60, %p61
    %p63 = scmp.ne.s32.totalorder %s51, %s52
    %p64 = scmp.eq.s32.totalorder %s21, 1
    %p65 = por %p63, %p64
    %p67 = scmp.ne.s32.totalorder %s52, %s66
    %p68 = scmp.eq.s32.totalorder %s21, 0
    %p69 = por %p67, %p68
    %s71 = sadd.s32 %s70, 1
    %p74 = scmp.eq.s32.totalorder %s15, 1
    %p75 = scmp.ne.s32.totalorder %s70, %s72
    %p76 = scmp.eq.s32.totalorder %s15, 0
    %p77 = por %p75, %p76
    %p78 = scmp.ne.s32.totalorder %s70, %s72
    %p79 = scmp.eq.s32.totalorder %s20, 1
    %p80 = por %p78, %p79
    %p81 = scmp.ne.s32.totalorder %s72, %s73
    %p82 = scmp.eq.s32.totalorder %s20, 0
    %p83 = por %p81, %p82
    %p84 = scmp.ne.s32.totalorder %s72, %s73
    %p85 = scmp.eq.s32.totalorder %s21, 1
    %p86 = por %p84, %p85
    %p88 = scmp.ne.s32.totalorder %s73, %s87
    %p89 = scmp.eq.s32.totalorder %s21, 0
    %p90 = por %p88, %p89
    %s92 = sadd.s32 %s91, 1
    %p95 = scmp.eq.s32.totalorder %s15, 1
    %p96 = scmp.ne.s32.totalorder %s91, %s93
    %p97 = scmp.eq.s32.totalorder %s15, 0
    %p98 = por %p96, %p97
    %p99 = scmp.ne.s32.totalorder %s91, %s93
    %p100 = scmp.eq.s32.totalorder %s20, 1
    %p101 = por %p99, %p100
    %p102 = scmp.ne.s32.totalorder %s93, %s94
    %p103 = scmp.eq.s32.totalorder %s20, 0
    %p104 = por %p102, %p103
    %p105 = scmp.ne.s32.totalorder %s93, %s94
    %p106 = scmp.eq.s32.totalorder %s21, 1
    %p107 = por %p105, %p106
    %p109 = scmp.ne.s32.totalorder %s94, %s108
    %p110 = scmp.eq.s32.totalorder %s21, 0
    %p111 = por %p109, %p110
    %s113 = sadd.s32 %s112, 1
    %p116 = scmp.eq.s32.totalorder %s15, 1
    %p117 = scmp.ne.s32.totalorder %s112, %s114
    %p118 = scmp.eq.s32.totalorder %s15, 0
    %p119 = por %p117, %p118
    %p120 = scmp.ne.s32.totalorder %s112, %s114
    %p121 = scmp.eq.s32.totalorder %s20, 1
    %p122 = por %p120, %p121
    %p123 = scmp.ne.s32.totalorder %s114, %s115
    %p124 = scmp.eq.s32.totalorder %s20, 0
    %p125 = por %p123, %p124
    %p126 = scmp.ne.s32.totalorder %s114, %s115
    %p127 = scmp.eq.s32.totalorder %s21, 1
    %p128 = por %p126, %p127
    %p130 = scmp.ne.s32.totalorder %s115, %s129
    %p131 = scmp.eq.s32.totalorder %s21, 0
    %p132 = por %p130, %p131
    %s134 = sadd.s32 %s133, 1
    %p137 = scmp.eq.s32.totalorder %s15, 1
    %p138 = scmp.ne.s32.totalorder %s133, %s135
    %p139 = scmp.eq.s32.totalorder %s15, 0
    %p140 = por %p138, %p139
    %p141 = scmp.ne.s32.totalorder %s133, %s135
    %p142 = scmp.eq.s32.totalorder %s20, 1
    %p143 = por %p141, %p142
    %p144 = scmp.ne.s32.totalorder %s135, %s136
    %p145 = scmp.eq.s32.totalorder %s20, 0
    %p146 = por %p144, %p145
    %p147 = scmp.ne.s32.totalorder %s135, %s136
    %p148 = scmp.eq.s32.totalorder %s21, 1
    %p149 = por %p147, %p148
    %p151 = scmp.ne.s32.totalorder %s136, %s150
    %p152 = scmp.eq.s32.totalorder %s21, 0
    %p153 = por %p151, %p152
    %s155 = sadd.s32 %s154, 1
    %p158 = scmp.eq.s32.totalorder %s15, 1
    %p159 = scmp.ne.s32.totalorder %s154, %s156
    %p160 = scmp.eq.s32.totalorder %s15, 0
    %p161 = por %p159, %p160
    %p162 = scmp.ne.s32.totalorder %s154, %s156
    %p163 = scmp.eq.s32.totalorder %s20, 1
    %p164 = por %p162, %p163
    %p165 = scmp.ne.s32.totalorder %s156, %s157
    %p166 = scmp.eq.s32.totalorder %s20, 0
    %p167 = por %p165, %p166
    %p168 = scmp.ne.s32.totalorder %s156, %s157
    %p169 = scmp.eq.s32.totalorder %s21, 1
    %p170 = por %p168, %p169
    %p172 = scmp.ne.s32.totalorder %s157, %s171
    %p173 = scmp.eq.s32.totalorder %s21, 0
    %p174 = por %p172, %p173
    %s176 = sadd.s32 %s175, 1
    %p179 = scmp.eq.s32.totalorder %s15, 1
    %p180 = scmp.ne.s32.totalorder %s175, %s177
    %p181 = scmp.eq.s32.totalorder %s15, 0
    %p182 = por %p180, %p181
    %p183 = scmp.ne.s32.totalorder %s175, %s177
    %p184 = scmp.eq.s32.totalorder %s20, 1
    %p185 = por %p183, %p184
    %p186 = scmp.ne.s32.totalorder %s177, %s178
    %p187 = scmp.eq.s32.totalorder %s20, 0
    %p188 = por %p186, %p187
    %p189 = scmp.ne.s32.totalorder %s177, %s178
    %p190 = scmp.eq.s32.totalorder %s21, 1
    %p191 = por %p189, %p190
    %p193 = scmp.ne.s32.totalorder %s178, %s192
    %p194 = scmp.eq.s32.totalorder %s21, 0
    %p195 = por %p193, %p194
    %s197 = sadd.s32 %s196, 1
    %p200 = scmp.eq.s32.totalorder %s15, 1
    %p201 = scmp.ne.s32.totalorder %s196, %s198
    %p202 = scmp.eq.s32.totalorder %s15, 0
    %p203 = por %p201, %p202
    %p204 = scmp.ne.s32.totalorder %s196, %s198
    %p205 = scmp.eq.s32.totalorder %s20, 1
    %p206 = por %p204, %p205
    %p207 = scmp.ne.s32.totalorder %s198, %s199
    %p208 = scmp.eq.s32.totalorder %s20, 0
    %p209 = por %p207, %p208
    %p210 = scmp.ne.s32.totalorder %s198, %s199
    %p211 = scmp.eq.s32.totalorder %s21, 1
    %p212 = por %p210, %p211
    %p214 = scmp.ne.s32.totalorder %s199, %s213
    %p215 = scmp.eq.s32.totalorder %s21, 0
    %p216 = por %p214, %p215
    %s217 = ssub.s32 %s15, %s22
    %p218 = scmp.eq.s32.totalorder %s217, 0
    %s220 = sadd.s32 %s219, 1
    %s221 = scalar_select %p218, %s219, %s220
    %p224 = pneg %p218
    %p225 = scmp.eq.s32.totalorder %s15, 1
    %p226 = por %p224, %p225
    %p227 = scmp.ne.s32.totalorder %s219, %s222
    %p228 = scmp.eq.s32.totalorder %s15, 0
    %p229 = por %p227, %p228
    %p230 = scmp.ne.s32.totalorder %s219, %s222
    %p231 = scmp.eq.s32.totalorder %s20, 1
    %p232 = por %p230, %p231
    %p233 = scmp.ne.s32.totalorder %s222, %s223
    %p234 = scmp.eq.s32.totalorder %s20, 0
    %p235 = por %p233, %p234
    %p236 = scmp.ne.s32.totalorder %s222, %s223
    %p237 = scmp.eq.s32.totalorder %s21, 1
    %p238 = por %p236, %p237
    %p240 = scmp.ne.s32.totalorder %s223, %s239
    %p241 = scmp.eq.s32.totalorder %s21, 0
    %p242 = por %p240, %p241
    %p243 = scmp.le.s32.totalorder 1, %s15
    %p244 = scmp.lt.s32.totalorder %s15, 3
    %p245 = pnand %p243, %p244
    %p246 = pneg %p245
    // Predicated region
    $region9: #{noise_regressor_forward.1} parent=5 // pred_check
      _
    $region10: #{noise_regressor_forward.1} parent=5 // pred_check_branch
      %248 = sbr.rel (%p245) target = $region12
    $region11: #{noise_regressor_forward.1} parent=5 // pred_region
      %s249 = ssub.s32 %s15, 1
      // Predicated region
      $region13: #{noise_regressor_forward.1} parent=11 // pred_check
        %p250 = pneg %p62
      $region14: #{noise_regressor_forward.1} parent=11 // pred_check_branch
        %252 = sbr.rel (%p250) target = $region16
      $region15: #{noise_regressor_forward.1} parent=11 // pred_region
        _
      $region16: #{noise_regressor_forward.1} parent=11 // pred_fallthru
        _
      // Predicated region
      $region17: #{noise_regressor_forward.1} parent=11 // pred_check
        %p253 = pneg %p83
      $region18: #{noise_regressor_forward.1} parent=11 // pred_check_branch
        %255 = sbr.rel (%p253) target = $region20
      $region19: #{noise_regressor_forward.1} parent=11 // pred_region
        _
      $region20: #{noise_regressor_forward.1} parent=11 // pred_fallthru
        _
      // Predicated region
      $region21: #{noise_regressor_forward.1} parent=11 // pred_check
        %p256 = pneg %p104
      $region22: #{noise_regressor_forward.1} parent=11 // pred_check_branch
        %258 = sbr.rel (%p256) target = $region24
      $region23: #{noise_regressor_forward.1} parent=11 // pred_region
        _
      $region24: #{noise_regressor_forward.1} parent=11 // pred_fallthru
        _
      // Predicated region
      $region25: #{noise_regressor_forward.1} parent=11 // pred_check
        %p259 = pneg %p125
      $region26: #{noise_regressor_forward.1} parent=11 // pred_check_branch
        %261 = sbr.rel (%p259) target = $region28
      $region27: #{noise_regressor_forward.1} parent=11 // pred_region
        _
      $region28: #{noise_regressor_forward.1} parent=11 // pred_fallthru
        _
      // Predicated region
      $region29: #{noise_regressor_forward.1} parent=11 // pred_check
        %p262 = pneg %p146
      $region30: #{noise_regressor_forward.1} parent=11 // pred_check_branch
        %264 = sbr.rel (%p262) target = $region32
      $region31: #{noise_regressor_forward.1} parent=11 // pred_region
        _
      $region32: #{noise_regressor_forward.1} parent=11 // pred_fallthru
        _
      // Predicated region
      $region33: #{noise_regressor_forward.1} parent=11 // pred_check
        %p265 = pneg %p167
      $region34: #{noise_regressor_forward.1} parent=11 // pred_check_branch
        %267 = sbr.rel (%p265) target = $region36
      $region35: #{noise_regressor_forward.1} parent=11 // pred_region
        _
      $region36: #{noise_regressor_forward.1} parent=11 // pred_fallthru
        _
      // Predicated region
      $region37: #{noise_regressor_forward.1} parent=11 // pred_check
        %p268 = pneg %p188
      $region38: #{noise_regressor_forward.1} parent=11 // pred_check_branch
        %270 = sbr.rel (%p268) target = $region40
      $region39: #{noise_regressor_forward.1} parent=11 // pred_region
        _
      $region40: #{noise_regressor_forward.1} parent=11 // pred_fallthru
        _
      // Predicated region
      $region41: #{noise_regressor_forward.1} parent=11 // pred_check
        %p271 = pneg %p209
      $region42: #{noise_regressor_forward.1} parent=11 // pred_check_branch
        %273 = sbr.rel (%p271) target = $region44
      $region43: #{noise_regressor_forward.1} parent=11 // pred_region
        _
      $region44: #{noise_regressor_forward.1} parent=11 // pred_fallthru
        _
    $region12: #{noise_regressor_forward.1} parent=5 // pred_fallthru
      _
    %p274 = scmp.lt.s32.totalorder %s15, 2
    // Predicated region
    $region45: #{noise_regressor_forward.1} parent=5 // pred_check
      %p275 = pneg %p274
    $region46: #{noise_regressor_forward.1} parent=5 // pred_check_branch
      %277 = sbr.rel (%p275) target = $region48
    $region47: #{noise_regressor_forward.1} parent=5 // pred_region
      // Predicated region
      $region49: #{noise_regressor_forward.1} parent=47 // pred_check
        %p278 = pneg %p35
      $region50: #{noise_regressor_forward.1} parent=47 // pred_check_branch
        %280 = sbr.rel (%p278) target = $region52
      $region51: #{noise_regressor_forward.1} parent=47 // pred_region
        %p281 = scmp.lt.s32.totalorder %s15, 1
        %s282 = scalar_select %p281, %s15, 1
        %s283 = smul.addr %s282, 2
        %s284 = smul.addr %s283, 2
        %s285 = scalar_lea.vmem %s0, %s284
      $region52: #{noise_regressor_forward.1} parent=47 // pred_fallthru
        _
    $region48: #{noise_regressor_forward.1} parent=5 // pred_fallthru
      _
    %p286 = scmp.le.s32.totalorder 1, %s15
    %p287 = scmp.lt.s32.totalorder %s15, 3
    %p288 = pnand %p286, %p287
    %p289 = pneg %p288
    // Predicated region
    $region53: #{noise_regressor_forward.1} parent=5 // pred_check
      _
    $region54: #{noise_regressor_forward.1} parent=5 // pred_check_branch
      %291 = sbr.rel (%p288) target = $region56
    $region55: #{noise_regressor_forward.1} parent=5 // pred_region
      %s292 = ssub.s32 %s15, 1
      %p293 = scmp.lt.s32.totalorder %s20, 1
      %s294 = scalar_select %p293, %s20, 1
      %s295 = smul.addr %s294, 2
      %s296 = smul.addr %s295, 2
      %s297 = scalar_lea.vmem %s0, %s296
      %p298 = pneg %p41
      %p299 = pneg %p38
      %p300 = pneg %p62
      %p301 = pneg %p59
      %p302 = pneg %p83
      %p303 = pneg %p80
      %p304 = pneg %p104
      %p305 = pneg %p101
      %p306 = pneg %p125
      %p307 = pneg %p122
      %p308 = pneg %p146
      %p309 = pneg %p143
      %p310 = pneg %p167
      %p311 = pneg %p164
      %p312 = pneg %p188
      %p313 = pneg %p185
      %p314 = pneg %p209
      %p315 = pneg %p206
      %p316 = pneg %p235
      %p317 = pneg %p232
      %p318 = scmp.lt.s32.totalorder %s20, 1
      %s319 = scalar_select %p318, %s20, 1
      %s320 = scalar_lea.vmem %s9, %s319
      %p321 = scmp.lt.s32.totalorder %s20, 1
      %s322 = scalar_select %p321, %s20, 1
      %s323 = smul.addr %s322, 2
      %s324 = smul.addr %s323, 2
      %s325 = scalar_lea.vmem %s0, %s324
      %p326 = scmp.lt.s32.totalorder %s20, 1
      %s327 = scalar_select %p326, %s20, 1
      %s328 = scalar_lea.vmem %s9, %s327
      %v332 = vld [vmem:[%s7] sm:$0xf]
      %vm333 = vcmp.gt.f32.partialorder %v332, 0.5
      %v334 = vld [vmem:[%s8] sm:$0x3]
      %vm335 = vcmp.gt.f32.partialorder %v334, 0.5
      %336 = vst [vmem:[#allocation2] sm:$0xff] 0
      %vm337 = vcmask 519168
      %338 = vst.msk [vmem:[#allocation2 + $0x8] sm:$0xf] %vm337, 0
      %v339 = vld [vmem:[%s325] sm:$0xf]
      %v342 = vunpack.c.l.s4 1983009808
      %v343 = vunpack.c.0.s8 %v342
      %v344 = vlaneseq
      %v345 = vshrl.u32 %v344, 7
      %v346 = vsub.s32 %v343, %v345
      %v347 = vrot.slane %v339, %v346
      %348 = vrot.lane.b32.xlu0 %v347, 17
      %v349 = vpop.permute.xlu0 %348
      %v350 = vrot.slane %v349, 4
      %vm351 = vcmask 138240
      %v352 = vsel %vm351, %v350, %v349
      %vm355 = vcmask 1041544
      %vm356 = vsmask.f32 1280
      %vm357 = vmand %vm355, %vm356
      %vm358 = vcmask 1045508
      %vm359 = vsmask.f32 5376
      %vm360 = vmand %vm358, %vm359
      %vm361 = vmor %vm360, %vm357
      %v362 = vld [vmem:[#allocation2] sm:$0x33]
      %v363 = vsel %vm361, %v352, %v362
      %364 = vst [vmem:[#allocation2] sm:$0x33] %v363
      %vm365 = vcmask 132096
      %vm366 = vmand %vm365, %vm356
      %v367 = vld [vmem:[#allocation2 + $0x8] sm:$0x3]
      %v368 = vsel %vm366, %v350, %v367
      %369 = vst [vmem:[#allocation2 + $0x8] sm:$0x3] %v368
      %v370 = vld [vmem:[#allocation2] sm:$0xff]
      %v371 = vsel %vm333, 1, 0
      %v372 = vlaneseq
      %v373 = vshrl.u32 %v372, 7
      %v374 = vsub.s32 0, %v373
      %v375 = vrot.slane %v371, %v374
      %v376 = vlaneseq
      %v377 = vshrl.u32 %v376, 7
      %v378 = vsub.s32 2, %v377
      %v379 = vrot.slane %v371, %v378
      %v380 = vlaneseq
      %v381 = vshrl.u32 %v380, 7
      %v382 = vsub.s32 0, %v381
      %v383 = vrot.slane %v375, %v382
      %v384 = vlaneseq
      %v385 = vshrl.u32 %v384, 7
      %v386 = vsub.s32 0, %v385
      %v387 = vrot.slane %v379, %v386
      %vm388 = vcmp.eq.s32.totalorder %v383, 1
      %vm389 = vcmp.eq.s32.totalorder %v387, 1
      %vm390 = vmpackc.low %vm389, %vm388
      %v391 = vsel %vm390, %v370, 0
      %v392 = vld [vmem:[#allocation2 + $0x8] sm:$0xf]
      %v393 = vlaneseq
      %v394 = vshrl.u32 %v393, 7
      %v395 = vsub.s32 1, %v394
      %v396 = vrot.slane %v371, %v395
      %v397 = vlaneseq
      %v398 = vshrl.u32 %v397, 7
      %v399 = vsub.s32 3, %v398
      %v400 = vrot.slane %v371, %v399
      %v401 = vlaneseq
      %v402 = vshrl.u32 %v401, 7
      %v403 = vsub.s32 1, %v402
      %v404 = vrot.slane %v396, %v403
      %v405 = vlaneseq
      %v406 = vshrl.u32 %v405, 7
      %v407 = vsub.s32 1, %v406
      %v408 = vrot.slane %v400, %v407
      %vm409 = vcmp.eq.s32.totalorder %v404, 1
      %vm410 = vcmp.eq.s32.totalorder %v408, 1
      %vm411 = vmpackc.low %vm410, %vm409
      %v412 = vsel %vm411, 65537, 0
      %413 = vrot.lane.b32.xlu0 %v412, 2
      %v414 = vpop.permute.xlu0 %413
      %v415 = vrot.slane %v414, 4
      %vm416 = vcmask 15360
      %v417 = vsel %vm416, %v415, %v414
      %vm418 = vcmp.ne.s16.totalorder %v417, 0
      %vm419 = vcmp.ne.s16.totalorder %v415, 0
      %v420 = vsel %vm418, %v370, 0
      %v421 = vsel %vm419, %v392, 0
      %v422 = vsel %vm390, 65537, 0
      %423 = vrot.lane.b32.xlu0 %v422, 16
      %v424 = vpop.permute.xlu0 %423
      %v425 = vrot.slane %v424, 4
      %vm426 = vcmask 130048
      %v427 = vsel %vm426, %v425, %v424
      %vm428 = vcmp.ne.s16.totalorder %v427, 0
      %vm429 = vcmp.ne.s16.totalorder %v425, 0
      %v430 = vsel %vm428, %v370, 0
      %v431 = vsel %vm429, %v392, 0
      %432 = vrot.lane.b32.xlu0 %v412, 18
      %v433 = vpop.permute.xlu0 %432
      %v434 = vrot.slane %v433, 4
      %vm435 = vcmask 146432
      %v436 = vsel %vm435, %v434, %v433
      %vm437 = vcmp.ne.s16.totalorder %v436, 0
      %vm438 = vcmp.ne.s16.totalorder %v434, 0
      %v439 = vsel %vm437, %v370, 0
      %v440 = vsel %vm438, %v392, 0
      %441 = vrot.lane.b32.xlu0 %v422, 32
      %v442 = vpop.permute.xlu0 %441
      %v443 = vrot.slane %v442, 4
      %vm444 = vcmask 261120
      %v445 = vsel %vm444, %v443, %v442
      %vm446 = vcmp.ne.s16.totalorder %v445, 0
      %vm447 = vcmp.ne.s16.totalorder %v443, 0
      %v448 = vsel %vm446, %v370, 0
      %v449 = vsel %vm447, %v392, 0
      %450 = vrot.lane.b32.xlu0 %v412, 34
      %v451 = vpop.permute.xlu0 %450
      %v452 = vrot.slane %v451, 4
      %vm453 = vcmask 277504
      %v454 = vsel %vm453, %v452, %v451
      %vm455 = vcmp.ne.s16.totalorder %v454, 0
      %vm456 = vcmp.ne.s16.totalorder %v452, 0
      %v457 = vsel %vm455, %v370, 0
      %v458 = vsel %vm456, %v392, 0
      %v460 = vunpack.c.l.b16 %v391
      %v461 = vunpack.c.h.b16 %v391
      %v462 = vpack.c.b16 %v460, %v460
      %v463 = vpack.c.b16 %v461, %v461
      %v466 = vunpack.c.l.b16 %v370
      %v467 = vunpack.c.h.b16 %v370
      %v468 = vunpack.c.l.b16 %v392
      %v469 = vpack.c.b16 %v466, %v466
      %v470 = vpack.c.b16 %v467, %v467
      %v471 = vpack.c.b16 %v468, %v468
      %472 = vrot.lane.b32.xlu0 %v469, 127
      %v473 = vpop.permute.xlu0 %472
      %474 = vrot.lane.b32.xlu0 %v470, 127
      %v475 = vpop.permute.xlu0 %474
      %476 = vrot.lane.b32.xlu0 %v471, 127
      %v477 = vpop.permute.xlu0 %476
      %vm478 = vcmask 1039360
      %v479 = vsel %vm478, %v473, %v475
      %v480 = vsel %vm478, %v475, %v477
      %v483 = vunpack.c.l.b16 %v420
      %v484 = vunpack.c.h.b16 %v420
      %v485 = vunpack.c.l.b16 %v421
      %v486 = vpack.c.b16 %v483, %v483
      %v487 = vpack.c.b16 %v484, %v484
      %v488 = vpack.c.b16 %v485, %v485
      %489 = vrot.lane.b32.xlu0 %v486, 126
      %v490 = vpop.permute.xlu0 %489
      %491 = vrot.lane.b32.xlu0 %v487, 126
      %v492 = vpop.permute.xlu0 %491
      %493 = vrot.lane.b32.xlu0 %v488, 126
      %v494 = vpop.permute.xlu0 %493
      %vm495 = vcmask 1031168
      %v496 = vsel %vm495, %v490, %v492
      %v497 = vsel %vm495, %v492, %v494
      %v500 = vunpack.c.l.b16 %v430
      %v501 = vunpack.c.h.b16 %v430
      %v502 = vunpack.c.l.b16 %v431
      %v503 = vpack.c.b16 %v500, %v500
      %v504 = vpack.c.b16 %v501, %v501
      %v505 = vpack.c.b16 %v502, %v502
      %506 = vrot.lane.b32.xlu0 %v503, 112
      %v507 = vpop.permute.xlu0 %506
      %508 = vrot.lane.b32.xlu0 %v504, 112
      %v509 = vpop.permute.xlu0 %508
      %510 = vrot.lane.b32.xlu0 %v505, 112
      %v511 = vpop.permute.xlu0 %510
      %vm512 = vcmask 916480
      %v513 = vsel %vm512, %v507, %v509
      %v514 = vsel %vm512, %v509, %v511
      %515 = vrot.lane.b32.xlu0 %v469, 111
      %v516 = vpop.permute.xlu0 %515
      %517 = vrot.lane.b32.xlu0 %v470, 111
      %v518 = vpop.permute.xlu0 %517
      %519 = vrot.lane.b32.xlu0 %v471, 111
      %v520 = vpop.permute.xlu0 %519
      %vm521 = vcmask 908288
      %v522 = vsel %vm521, %v516, %v518
      %v523 = vsel %vm521, %v518, %v520
      %v526 = vunpack.c.l.b16 %v439
      %v527 = vunpack.c.h.b16 %v439
      %v528 = vunpack.c.l.b16 %v440
      %v529 = vpack.c.b16 %v526, %v526
      %v530 = vpack.c.b16 %v527, %v527
      %v531 = vpack.c.b16 %v528, %v528
      %532 = vrot.lane.b32.xlu0 %v529, 110
      %v533 = vpop.permute.xlu0 %532
      %534 = vrot.lane.b32.xlu0 %v530, 110
      %v535 = vpop.permute.xlu0 %534
      %536 = vrot.lane.b32.xlu0 %v531, 110
      %v537 = vpop.permute.xlu0 %536
      %vm538 = vcmask 900096
      %v539 = vsel %vm538, %v533, %v535
      %v540 = vsel %vm538, %v535, %v537
      %v543 = vunpack.c.l.b16 %v448
      %v544 = vunpack.c.h.b16 %v448
      %v545 = vunpack.c.l.b16 %v449
      %v546 = vpack.c.b16 %v543, %v543
      %v547 = vpack.c.b16 %v544, %v544
      %v548 = vpack.c.b16 %v545, %v545
      %549 = vrot.lane.b32.xlu0 %v546, 96
      %v550 = vpop.permute.xlu0 %549
      %551 = vrot.lane.b32.xlu0 %v547, 96
      %v552 = vpop.permute.xlu0 %551
      %553 = vrot.lane.b32.xlu0 %v548, 96
      %v554 = vpop.permute.xlu0 %553
      %vm555 = vcmask 785408
      %v556 = vsel %vm555, %v550, %v552
      %v557 = vsel %vm555, %v552, %v554
      %558 = vrot.lane.b32.xlu0 %v469, 95
      %v559 = vpop.permute.xlu0 %558
      %560 = vrot.lane.b32.xlu0 %v470, 95
      %v561 = vpop.permute.xlu0 %560
      %562 = vrot.lane.b32.xlu0 %v471, 95
      %v563 = vpop.permute.xlu0 %562
      %vm564 = vcmask 777216
      %v565 = vsel %vm564, %v559, %v561
      %v566 = vsel %vm564, %v561, %v563
      %v569 = vunpack.c.l.b16 %v457
      %v570 = vunpack.c.h.b16 %v457
      %v571 = vunpack.c.l.b16 %v458
      %v572 = vpack.c.b16 %v569, %v569
      %v573 = vpack.c.b16 %v570, %v570
      %v574 = vpack.c.b16 %v571, %v571
      %575 = vrot.lane.b32.xlu0 %v572, 94
      %v576 = vpop.permute.xlu0 %575
      %577 = vrot.lane.b32.xlu0 %v573, 94
      %v578 = vpop.permute.xlu0 %577
      %579 = vrot.lane.b32.xlu0 %v574, 94
      %v580 = vpop.permute.xlu0 %579
      %vm581 = vcmask 769024
      %v582 = vsel %vm581, %v576, %v578
      %v583 = vsel %vm581, %v578, %v580
      %vm584 = vcmask 1043456
      %v587 = vsel %vm584, %v462, %v479
      %v591 = vsel %vm584, %v463, %v480
      %v595 = vsel %vm584, %v496, %v513
      %v599 = vsel %vm584, %v497, %v514
      %v603 = vsel %vm584, %v522, %v539
      %v607 = vsel %vm584, %v523, %v540
      %v611 = vsel %vm584, %v556, %v565
      %v615 = vsel %vm584, %v557, %v566
      %v617 = vld [vmem:[%s1] sm:$0xf]
      %v618 = vld [vmem:[%s1 + $0x4] sm:$0xf]
      %v621 = vunpack.c.l.b16 %v617
      %v622 = vunpack.c.l.b16 %v618
      %v623 = vpack.c.b16 %v622, %v621
      %vm624 = vcmask 588800
      %v626 = vsel %vm624, %v623, 0
      %v629 = vsel %vm584, %v582, 0
      %v632 = vsel %vm584, %v583, 0
      %634 = vmatprep.subr.bf16.mxu0 %v591
      %635 = vmatpush1.bf16.msra.mxu0 %v587
      %636 = vmatprep.subr.bf16.mxu0 %v599
      %637 = vmatpush1.bf16.msra.mxu0 %v595
      %638 = vmatprep.subr.bf16.mxu0 %v607
      %639 = vmatpush1.bf16.msra.mxu0 %v603
      %640 = vmatprep.subr.bf16.mxu0 %v615
      %641 = vmatpush1.bf16.msra.mxu0 %v611
      %642 = vmatprep.subr.bf16.mxu0 %v632
      %643 = vmatpush1.bf16.msra.mxu0 %v629
      %644 = vmatprep.subr.bf16.mxu0 0
      %645 = vmatpush1.bf16.msra.mxu0 0
      %646 = vmatprep.subr.bf16.mxu0 0
      %647 = vmatpush1.bf16.msra.mxu0 0
      %648 = vmatprep.subr.bf16.mxu0 0
      %649 = vmatpush1.bf16.msra.mxu0 0
      %650 = vmatprep.subr.bf16.mxu0 0
      %651 = vmatpush1.bf16.msra.mxu0 0
      %652 = vmatprep.subr.bf16.mxu0 0
      %653 = vmatpush1.bf16.msra.mxu0 0
      %654 = vmatprep.subr.bf16.mxu0 0
      %655 = vmatpush1.bf16.msra.mxu0 0
      %656 = vmatprep.subr.bf16.mxu0 0
      %657 = vmatpush1.bf16.msra.mxu0 0
      %658 = vmatprep.subr.bf16.mxu0 0
      %659 = vmatpush1.bf16.msra.mxu0 0
      %660 = vmatprep.subr.bf16.mxu0 0
      %661 = vmatpush1.bf16.msra.mxu0 0
      %662 = vmatprep.subr.bf16.mxu0 0
      %663 = vmatpush1.bf16.msra.mxu0 0
      %664 = vmatprep.subr.bf16.mxu0 0
      %665 = vmatpush1.bf16.msra.mxu0 0
      %666 = vmatprep.mubr.bf16.mxu0 0
      %667 = vmatmul.mubr.bf16.gmra.mrb[0].mxu0 %v626
      %v668 = vpop.f32.mrb[0].mxu0
      %v669 = vadd.f32 0.0, %v668
      %v670 = vpop.f32.mrb[0].mxu0
      %v671 = vadd.f32 0.0, %v670
      %v672 = vpop.f32.mrb[0].mxu0
      %v673 = vadd.f32 0.0, %v672
      %v674 = vpop.f32.mrb[0].mxu0
      %v675 = vadd.f32 0.0, %v674
      %676 = vdwg.mxu0
      %v677 = vmax.f32 %v669, 0.0
      %v678 = vmax.f32 %v671, 0.0
      %v679 = vmax.f32 %v673, 0.0
      %v680 = vmax.f32 %v675, 0.0
      %v681 = vpack.c.bf16 %v679, %v677
      %v682 = vpack.c.bf16 %v680, %v678
      %v683 = vld [vmem:[%s5] sm:$0xf]
      %v684 = vld [vmem:[%s5 + $0x4] sm:$0xf]
      %v685 = vld [vmem:[%s5 + $0x8] sm:$0xf]
      %v686 = vld [vmem:[%s5 + $0xc] sm:$0xf]
      %v687 = vld [vmem:[%s5 + $0x10] sm:$0xf]
      %v688 = vld [vmem:[%s5 + $0x14] sm:$0xf]
      %v689 = vld [vmem:[%s5 + $0x18] sm:$0xf]
      %v690 = vld [vmem:[%s5 + $0x1c] sm:$0xf]
      %v691 = vld [vmem:[%s5 + $0x20] sm:$0xf]
      %v692 = vld [vmem:[%s5 + $0x24] sm:$0xf]
      %v693 = vld [vmem:[%s5 + $0x28] sm:$0xf]
      %v694 = vld [vmem:[%s5 + $0x2c] sm:$0xf]
      %v695 = vld [vmem:[%s5 + $0x30] sm:$0xf]
      %v696 = vld [vmem:[%s5 + $0x34] sm:$0xf]
      %v697 = vld [vmem:[%s5 + $0x38] sm:$0xf]
      %v698 = vld [vmem:[%s5 + $0x3c] sm:$0xf]
      %v699 = vld [vmem:[%s5 + $0x40] sm:$0xf]
      %v700 = vld [vmem:[%s5 + $0x44] sm:$0xf]
      %v701 = vld [vmem:[%s5 + $0x48] sm:$0xf]
      %v702 = vld [vmem:[%s5 + $0x4c] sm:$0xf]
      %v703 = vld [vmem:[%s5 + $0x50] sm:$0xf]
      %v704 = vld [vmem:[%s5 + $0x54] sm:$0xf]
      %v705 = vld [vmem:[%s5 + $0x58] sm:$0xf]
      %v706 = vld [vmem:[%s5 + $0x5c] sm:$0xf]
      %v707 = vld [vmem:[%s5 + $0x60] sm:$0xf]
      %v708 = vld [vmem:[%s5 + $0x64] sm:$0xf]
      %v709 = vld [vmem:[%s5 + $0x68] sm:$0xf]
      %v710 = vld [vmem:[%s5 + $0x6c] sm:$0xf]
      %v711 = vld [vmem:[%s5 + $0x70] sm:$0xf]
      %v712 = vld [vmem:[%s5 + $0x74] sm:$0xf]
      %v713 = vld [vmem:[%s5 + $0x78] sm:$0xf]
      %v714 = vld [vmem:[%s5 + $0x7c] sm:$0xf]
      %v747 = vunpack.c.l.b16 %v683
      %v748 = vunpack.c.l.b16 %v684
      %v749 = vunpack.c.l.b16 %v685
      %v750 = vunpack.c.l.b16 %v686
      %v751 = vunpack.c.l.b16 %v687
      %v752 = vunpack.c.l.b16 %v688
      %v753 = vunpack.c.l.b16 %v689
      %v754 = vunpack.c.l.b16 %v690
      %v755 = vunpack.c.l.b16 %v691
      %v756 = vunpack.c.l.b16 %v692
      %v757 = vunpack.c.l.b16 %v693
      %v758 = vunpack.c.l.b16 %v694
      %v759 = vunpack.c.l.b16 %v695
      %v760 = vunpack.c.l.b16 %v696
      %v761 = vunpack.c.l.b16 %v697
      %v762 = vunpack.c.l.b16 %v698
      %v763 = vunpack.c.l.b16 %v699
      %v764 = vunpack.c.l.b16 %v700
      %v765 = vunpack.c.l.b16 %v701
      %v766 = vunpack.c.l.b16 %v702
      %v767 = vunpack.c.l.b16 %v703
      %v768 = vunpack.c.l.b16 %v704
      %v769 = vunpack.c.l.b16 %v705
      %v770 = vunpack.c.l.b16 %v706
      %v771 = vunpack.c.l.b16 %v707
      %v772 = vunpack.c.l.b16 %v708
      %v773 = vunpack.c.l.b16 %v709
      %v774 = vunpack.c.l.b16 %v710
      %v775 = vunpack.c.l.b16 %v711
      %v776 = vunpack.c.l.b16 %v712
      %v777 = vunpack.c.l.b16 %v713
      %v778 = vunpack.c.l.b16 %v714
      %v779 = vpack.c.b16 %v748, %v747
      %v780 = vpack.c.b16 %v750, %v749
      %v781 = vpack.c.b16 %v752, %v751
      %v782 = vpack.c.b16 %v754, %v753
      %v783 = vpack.c.b16 %v756, %v755
      %v784 = vpack.c.b16 %v758, %v757
      %v785 = vpack.c.b16 %v760, %v759
      %v786 = vpack.c.b16 %v762, %v761
      %v787 = vpack.c.b16 %v764, %v763
      %v788 = vpack.c.b16 %v766, %v765
      %v789 = vpack.c.b16 %v768, %v767
      %v790 = vpack.c.b16 %v770, %v769
      %v791 = vpack.c.b16 %v772, %v771
      %v792 = vpack.c.b16 %v774, %v773
      %v793 = vpack.c.b16 %v776, %v775
      %v794 = vpack.c.b16 %v778, %v777
      %811 = vmatprep.subr.bf16.mxu0 0
      %812 = vmatpush1.bf16.msra.mxu0 %v779
      %813 = vmatprep.subr.bf16.mxu0 0
      %814 = vmatpush1.bf16.msra.mxu0 %v780
      %815 = vmatprep.subr.bf16.mxu0 0
      %816 = vmatpush1.bf16.msra.mxu0 %v781
      %817 = vmatprep.subr.bf16.mxu0 0
      %818 = vmatpush1.bf16.msra.mxu0 %v782
      %819 = vmatprep.subr.bf16.mxu0 0
      %820 = vmatpush1.bf16.msra.mxu0 %v783
      %821 = vmatprep.subr.bf16.mxu0 0
      %822 = vmatpush1.bf16.msra.mxu0 %v784
      %823 = vmatprep.subr.bf16.mxu0 0
      %824 = vmatpush1.bf16.msra.mxu0 %v785
      %825 = vmatprep.subr.bf16.mxu0 0
      %826 = vmatpush1.bf16.msra.mxu0 %v786
      %827 = vmatprep.subr.bf16.mxu0 0
      %828 = vmatpush1.bf16.msra.mxu0 %v787
      %829 = vmatprep.subr.bf16.mxu0 0
      %830 = vmatpush1.bf16.msra.mxu0 %v788
      %831 = vmatprep.subr.bf16.mxu0 0
      %832 = vmatpush1.bf16.msra.mxu0 %v789
      %833 = vmatprep.subr.bf16.mxu0 0
      %834 = vmatpush1.bf16.msra.mxu0 %v790
      %835 = vmatprep.subr.bf16.mxu0 0
      %836 = vmatpush1.bf16.msra.mxu0 %v791
      %837 = vmatprep.subr.bf16.mxu0 0
      %838 = vmatpush1.bf16.msra.mxu0 %v792
      %839 = vmatprep.subr.bf16.mxu0 0
      %840 = vmatpush1.bf16.msra.mxu0 %v793
      %841 = vmatprep.subr.bf16.mxu0 0
      %842 = vmatpush1.bf16.msra.mxu0 %v794
      %843 = vmatprep.mubr.bf16.mxu0 %v682
      %844 = vmatmul.mubr.bf16.gmra.mrb[0].mxu0 %v681
      %v845 = vpop.f32.mrb[0].mxu0
      %v846 = vadd.f32 0.0, %v845
      %v847 = vpop.f32.mrb[0].mxu0
      %v848 = vpop.f32.mrb[0].mxu0
      %v849 = vadd.f32 0.0, %v848
      %v850 = vpop.f32.mrb[0].mxu0
      %851 = vdwg.mxu0
      %vm852 = vcmask 785408
      %853 = vst.msk [vmem:[#allocation3] sm:$0xff] %vm852, 0
      %v854 = vpack.c.bf16 %v849, %v846
      %856 = vrot.lane.b32.xlu0 %v854, 9
      %v857 = vpop.permute.xlu0 %856
      %vm859 = vcmask 597064
      %860 = vst.msk [vmem:[#allocation3] sm:$0xff] %vm859, %v857
      %v861 = vld [vmem:[#allocation3] sm:$0xff]
      %v862 = vsel %vm335, 1, 0
      %v863 = vlaneseq
      %v864 = vshrl.u32 %v863, 7
      %v865 = vsub.s32 0, %v864
      %v866 = vrot.slane %v862, %v865
      %vm867 = vcmp.eq.s32.totalorder %v866, 1
      %vm868 = vmpackc.low %vm867, %vm867
      %v869 = vsel %vm868, 65537, 0
      %v870 = vlaneseq
      %v871 = vshrl.u32 %v870, 7
      %v872 = vsub.s32 0, %v871
      %v873 = vrot.slane %v869, %v872
      %vm874 = vcmp.ne.s16.totalorder %v873, 0
      %v875 = vsel %vm874, %v861, 0
      %v876 = vlaneseq
      %v877 = vshrl.u32 %v876, 7
      %v878 = vsub.s32 1, %v877
      %v879 = vrot.slane %v862, %v878
      %vm880 = vcmp.eq.s32.totalorder %v879, 1
      %vm881 = vmpackc.low %vm880, %vm880
      %v882 = vsel %vm881, 65537, 0
      %v883 = vlaneseq
      %v884 = vshrl.u32 %v883, 7
      %v885 = vsub.s32 0, %v884
      %v886 = vrot.slane %v882, %v885
      %887 = vrot.lane.b32.xlu0 %v886, 2
      %v888 = vpop.permute.xlu0 %887
      %vm889 = vcmp.ne.s16.totalorder %v888, 0
      %v890 = vsel %vm889, %v861, 0
      %891 = vrot.lane.b32.xlu0 %v873, 8
      %v892 = vpop.permute.xlu0 %891
      %vm893 = vcmp.ne.s16.totalorder %v892, 0
      %v894 = vsel %vm893, %v861, 0
      %895 = vrot.lane.b32.xlu0 %v886, 10
      %v896 = vpop.permute.xlu0 %895
      %vm897 = vcmp.ne.s16.totalorder %v896, 0
      %v898 = vsel %vm897, %v861, 0
      %899 = vrot.lane.b32.xlu0 %v873, 16
      %v900 = vpop.permute.xlu0 %899
      %vm901 = vcmp.ne.s16.totalorder %v900, 0
      %v902 = vsel %vm901, %v861, 0
      %903 = vrot.lane.b32.xlu0 %v886, 18
      %v904 = vpop.permute.xlu0 %903
      %vm905 = vcmp.ne.s16.totalorder %v904, 0
      %v906 = vsel %vm905, %v861, 0
      %908 = vrot.lane.b32.xlu0 %v861, 127
      %v909 = vpop.permute.xlu0 %908
      %912 = vrot.lane.b32.xlu0 %v890, 126
      %v913 = vpop.permute.xlu0 %912
      %916 = vrot.lane.b32.xlu0 %v894, 120
      %v917 = vpop.permute.xlu0 %916
      %919 = vrot.lane.b32.xlu0 %v861, 119
      %v920 = vpop.permute.xlu0 %919
      %923 = vrot.lane.b32.xlu0 %v898, 118
      %v924 = vpop.permute.xlu0 %923
      %927 = vrot.lane.b32.xlu0 %v902, 112
      %v928 = vpop.permute.xlu0 %927
      %930 = vrot.lane.b32.xlu0 %v861, 111
      %v931 = vpop.permute.xlu0 %930
      %934 = vrot.lane.b32.xlu0 %v906, 110
      %v935 = vpop.permute.xlu0 %934
      %v937 = vld [vmem:[%s2] sm:$0xff]
      %v938 = vld [vmem:[%s2 + $0x8] sm:$0xff]
      %v939 = vld [vmem:[%s2 + $0x10] sm:$0xff]
      %v940 = vld [vmem:[%s2 + $0x18] sm:$0xff]
      %v945 = vunpack.c.l.b16 %v937
      %v946 = vunpack.c.h.b16 %v937
      %v947 = vunpack.c.l.b16 %v938
      %v948 = vunpack.c.h.b16 %v938
      %v949 = vunpack.c.l.b16 %v939
      %v950 = vunpack.c.h.b16 %v939
      %v951 = vunpack.c.l.b16 %v940
      %v952 = vunpack.c.h.b16 %v940
      %v953 = vpack.c.b16 %v947, %v945
      %v954 = vpack.c.b16 %v948, %v946
      %v955 = vpack.c.b16 %v951, %v949
      %v956 = vpack.c.b16 %v952, %v950
      %vm959 = vcmask 130048
      %v961 = vsel %vm959, %v954, 0
      %v964 = vsel %vm959, %v956, 0
      %966 = vmatprep.subr.bf16.mxu0 0
      %967 = vmatpush1.bf16.msra.mxu0 %v875
      %968 = vmatprep.subr.bf16.mxu0 0
      %969 = vmatpush1.bf16.msra.mxu0 %v909
      %970 = vmatprep.subr.bf16.mxu0 0
      %971 = vmatpush1.bf16.msra.mxu0 %v913
      %972 = vmatprep.subr.bf16.mxu0 0
      %973 = vmatpush1.bf16.msra.mxu0 %v917
      %974 = vmatprep.subr.bf16.mxu0 0
      %975 = vmatpush1.bf16.msra.mxu0 %v920
      %976 = vmatprep.subr.bf16.mxu0 0
      %977 = vmatpush1.bf16.msra.mxu0 %v924
      %978 = vmatprep.subr.bf16.mxu0 0
      %979 = vmatpush1.bf16.msra.mxu0 %v928
      %980 = vmatprep.subr.bf16.mxu0 0
      %981 = vmatpush1.bf16.msra.mxu0 %v931
      %982 = vmatprep.subr.bf16.mxu0 0
      %983 = vmatpush1.bf16.msra.mxu0 %v935
      %984 = vmatprep.subr.bf16.mxu0 0
      %985 = vmatpush1.bf16.msra.mxu0 0
      %986 = vmatprep.subr.bf16.mxu0 0
      %987 = vmatpush1.bf16.msra.mxu0 0
      %988 = vmatprep.subr.bf16.mxu0 0
      %989 = vmatpush1.bf16.msra.mxu0 0
      %990 = vmatprep.subr.bf16.mxu0 0
      %991 = vmatpush1.bf16.msra.mxu0 0
      %992 = vmatprep.subr.bf16.mxu0 0
      %993 = vmatpush1.bf16.msra.mxu0 0
      %994 = vmatprep.subr.bf16.mxu0 0
      %995 = vmatpush1.bf16.msra.mxu0 0
      %996 = vmatprep.subr.bf16.mxu0 0
      %997 = vmatpush1.bf16.msra.mxu0 0
      %998 = vmatprep.mubr.bf16.mxu0 %v961
      %999 = vmatmul.mubr.bf16.gmra.mrb[0].mxu0 %v953
      %v1000 = vpop.f32.mrb[0].mxu0
      %v1001 = vadd.f32 0.0, %v1000
      %v1002 = vpop.f32.mrb[0].mxu0
      %v1003 = vpop.f32.mrb[0].mxu0
      %v1004 = vadd.f32 0.0, %v1003
      %v1005 = vpop.f32.mrb[0].mxu0
      %1006 = vmatprep.mubr.bf16.mxu0 %v964
      %1007 = vmatmul.mubr.bf16.gmra.mrb[0].mxu0 %v955
      %v1008 = vpop.f32.mrb[0].mxu0
      %v1009 = vadd.f32 0.0, %v1008
      %v1010 = vpop.f32.mrb[0].mxu0
      %v1011 = vpop.f32.mrb[0].mxu0
      %v1012 = vadd.f32 0.0, %v1011
      %v1013 = vpop.f32.mrb[0].mxu0
      %1014 = vdwg.mxu0
      %v1015 = vmax.f32 %v1001, 0.0
      %v1016 = vmax.f32 %v1004, 0.0
      %v1017 = vmax.f32 %v1009, 0.0
      %v1018 = vmax.f32 %v1012, 0.0
      %v1019 = vpack.c.bf16 %v1016, %v1015
      %v1020 = vpack.c.bf16 %v1018, %v1017
      %v1021 = vld [vmem:[%s6] sm:$0xff]
      %v1022 = vld [vmem:[%s6 + $0x8] sm:$0xff]
      %v1023 = vld [vmem:[%s6 + $0x10] sm:$0xff]
      %v1024 = vld [vmem:[%s6 + $0x18] sm:$0xff]
      %v1025 = vld [vmem:[%s6 + $0x20] sm:$0xff]
      %v1026 = vld [vmem:[%s6 + $0x28] sm:$0xff]
      %v1027 = vld [vmem:[%s6 + $0x30] sm:$0xff]
      %v1028 = vld [vmem:[%s6 + $0x38] sm:$0xff]
      %v1037 = vunpack.c.l.b16 %v1021
      %v1038 = vunpack.c.h.b16 %v1021
      %v1039 = vunpack.c.l.b16 %v1022
      %v1040 = vunpack.c.h.b16 %v1022
      %v1041 = vunpack.c.l.b16 %v1023
      %v1042 = vunpack.c.h.b16 %v1023
      %v1043 = vunpack.c.l.b16 %v1024
      %v1044 = vunpack.c.h.b16 %v1024
      %v1045 = vunpack.c.l.b16 %v1025
      %v1046 = vunpack.c.h.b16 %v1025
      %v1047 = vunpack.c.l.b16 %v1026
      %v1048 = vunpack.c.h.b16 %v1026
      %v1049 = vunpack.c.l.b16 %v1027
      %v1050 = vunpack.c.h.b16 %v1027
      %v1051 = vunpack.c.l.b16 %v1028
      %v1052 = vunpack.c.h.b16 %v1028
      %v1053 = vpack.c.b16 %v1039, %v1037
      %v1054 = vpack.c.b16 %v1040, %v1038
      %v1055 = vpack.c.b16 %v1043, %v1041
      %v1056 = vpack.c.b16 %v1044, %v1042
      %v1057 = vpack.c.b16 %v1047, %v1045
      %v1058 = vpack.c.b16 %v1048, %v1046
      %v1059 = vpack.c.b16 %v1051, %v1049
      %v1060 = vpack.c.b16 %v1052, %v1050
      %vm1069 = vcmask 523264
      %v1071 = vsel %vm1069, %v1019, 0
      %v1074 = vsel %vm1069, %v1020, 0
      %1076 = vmatprep.subr.bf16.mxu0 %v1054
      %1077 = vmatpush1.bf16.msra.mxu0 %v1053
      %1078 = vmatprep.subr.bf16.mxu0 %v1056
      %1079 = vmatpush1.bf16.msra.mxu0 %v1055
      %1080 = vmatprep.subr.bf16.mxu0 %v1058
      %1081 = vmatpush1.bf16.msra.mxu0 %v1057
      %1082 = vmatprep.subr.bf16.mxu0 %v1060
      %1083 = vmatpush1.bf16.msra.mxu0 %v1059
      %1084 = vmatprep.subr.bf16.mxu0 0
      %1085 = vmatpush1.bf16.msra.mxu0 0
      %1086 = vmatprep.subr.bf16.mxu0 0
      %1087 = vmatpush1.bf16.msra.mxu0 0
      %1088 = vmatprep.subr.bf16.mxu0 0
      %1089 = vmatpush1.bf16.msra.mxu0 0
      %1090 = vmatprep.subr.bf16.mxu0 0
      %1091 = vmatpush1.bf16.msra.mxu0 0
      %1092 = vmatprep.subr.bf16.mxu0 0
      %1093 = vmatpush1.bf16.msra.mxu0 0
      %1094 = vmatprep.subr.bf16.mxu0 0
      %1095 = vmatpush1.bf16.msra.mxu0 0
      %1096 = vmatprep.subr.bf16.mxu0 0
      %1097 = vmatpush1.bf16.msra.mxu0 0
      %1098 = vmatprep.subr.bf16.mxu0 0
      %1099 = vmatpush1.bf16.msra.mxu0 0
      %1100 = vmatprep.subr.bf16.mxu0 0
      %1101 = vmatpush1.bf16.msra.mxu0 0
      %1102 = vmatprep.subr.bf16.mxu0 0
      %1103 = vmatpush1.bf16.msra.mxu0 0
      %1104 = vmatprep.subr.bf16.mxu0 0
      %1105 = vmatpush1.bf16.msra.mxu0 0
      %1106 = vmatprep.subr.bf16.mxu0 0
      %1107 = vmatpush1.bf16.msra.mxu0 0
      %1108 = vmatprep.mubr.bf16.mxu0 0
      %1109 = vmatmul.mubr.bf16.gmra.mrb[0].mxu0 %v1071
      %v1110 = vpop.f32.mrb[0].mxu0
      %v1111 = vadd.f32 0.0, %v1110
      %v1112 = vpop.f32.mrb[0].mxu0
      %v1113 = vadd.f32 0.0, %v1112
      %v1114 = vpop.f32.mrb[0].mxu0
      %v1115 = vadd.f32 0.0, %v1114
      %v1116 = vpop.f32.mrb[0].mxu0
      %v1117 = vadd.f32 0.0, %v1116
      %1118 = vmatprep.mubr.bf16.mxu0 0
      %1119 = vmatmul.mubr.bf16.gmra.mrb[0].mxu0 %v1074
      %v1120 = vpop.f32.mrb[0].mxu0
      %v1121 = vadd.f32 0.0, %v1120
      %v1122 = vpop.f32.mrb[0].mxu0
      %v1123 = vadd.f32 0.0, %v1122
      %v1124 = vpop.f32.mrb[0].mxu0
      %v1125 = vadd.f32 0.0, %v1124
      %v1126 = vpop.f32.mrb[0].mxu0
      %v1127 = vadd.f32 0.0, %v1126
      %1128 = vdwg.mxu0
      %1129 = vst [vmem:[#allocation4] sm:$0xff] 0
      %1130 = vst [vmem:[#allocation4 + $0x8] sm:$0xff] 0
      %1131 = vst.msk [vmem:[#allocation4 + $0x10] sm:$0xff] %vm1069, 0
      %1132 = vst [vmem:[#allocation4 + $0x18] sm:$0xff] 0
      %1133 = vst [vmem:[#allocation4 + $0x20] sm:$0xff] 0
      %1134 = vst.msk [vmem:[#allocation4 + $0x28] sm:$0xff] %vm1069, 0
      %1135 = vst [vmem:[#allocation4 + $0x30] sm:$0xff] 0
      %1136 = vst [vmem:[#allocation4 + $0x38] sm:$0xff] 0
      %1137 = vst.msk [vmem:[#allocation4 + $0x40] sm:$0xff] %vm1069, 0
      %1140 = vrot.lane.b32.xlu0 %v681, 17
      %v1141 = vpop.permute.xlu0 %1140
      %1142 = vrot.lane.b32.xlu0 %v682, 17
      %v1143 = vpop.permute.xlu0 %1142
      %v1144 = vsel %vm351, %v1141, %v1143
      %vm1148 = vcmask 1047688
      %1149 = vst.msk [vmem:[#allocation4] sm:$0xff] %vm1148, %v1141
      %1150 = vst [vmem:[#allocation4 + $0x8] sm:$0xff] %v1144
      %vm1151 = vcmask 138240
      %1152 = vst.msk [vmem:[#allocation4 + $0x10] sm:$0xff] %vm1151, %v1143
      %v1153 = vpack.c.bf16 %v1115, %v1111
      %v1154 = vpack.c.bf16 %v1117, %v1113
      %v1155 = vpack.c.bf16 %v1125, %v1121
      %v1156 = vpack.c.bf16 %v1127, %v1123
      %1161 = vrot.lane.b32.xlu0 %v1153, 17
      %v1162 = vpop.permute.xlu0 %1161
      %1163 = vrot.lane.b32.xlu0 %v1154, 17
      %v1164 = vpop.permute.xlu0 %1163
      %1165 = vrot.lane.b32.xlu0 %v1155, 17
      %v1166 = vpop.permute.xlu0 %1165
      %1167 = vrot.lane.b32.xlu0 %v1156, 17
      %v1168 = vpop.permute.xlu0 %1167
      %v1169 = vsel %vm351, %v1162, %v1164
      %v1170 = vsel %vm351, %v1166, %v1168
      %1177 = vst.msk [vmem:[#allocation4 + $0x18] sm:$0xff] %vm1148, %v1162
      %1178 = vst [vmem:[#allocation4 + $0x20] sm:$0xff] %v1169
      %1179 = vst.msk [vmem:[#allocation4 + $0x28] sm:$0xff] %vm1151, %v1164
      %1180 = vst.msk [vmem:[#allocation4 + $0x30] sm:$0xff] %vm1148, %v1166
      %1181 = vst [vmem:[#allocation4 + $0x38] sm:$0xff] %v1170
      %1182 = vst.msk [vmem:[#allocation4 + $0x40] sm:$0xff] %vm1151, %v1168
      %v1183 = vld [vmem:[#allocation4] sm:$0xff]
      %v1184 = vld [vmem:[#allocation4 + $0x8] sm:$0xff]
      %v1185 = vld [vmem:[#allocation4 + $0x18] sm:$0xff]
      %v1186 = vld [vmem:[#allocation4 + $0x20] sm:$0xff]
      %v1187 = vld [vmem:[#allocation4 + $0x30] sm:$0xff]
      %v1188 = vld [vmem:[#allocation4 + $0x38] sm:$0xff]
      %v1189 = vlaneseq
      %v1190 = vshrl.u32 %v1189, 7
      %v1191 = vsub.s32 0, %v1190
      %v1192 = vrot.slane %v422, %v1191
      %v1193 = vlaneseq
      %v1194 = vshrl.u32 %v1193, 7
      %v1195 = vsub.s32 4, %v1194
      %v1196 = vrot.slane %v422, %v1195
      %vm1197 = vcmp.ne.s16.totalorder %v1192, 0
      %vm1198 = vcmp.ne.s16.totalorder %v1196, 0
      %v1199 = vsel %vm1197, %v1183, 0
      %v1200 = vsel %vm1198, %v1184, 0
      %v1201 = vsel %vm1197, %v1185, 0
      %v1202 = vsel %vm1198, %v1186, 0
      %v1203 = vsel %vm1197, %v1187, 0
      %v1204 = vsel %vm1198, %v1188, 0
      %v1205 = vld [vmem:[#allocation4 + $0x10] sm:$0xff]
      %v1206 = vld [vmem:[#allocation4 + $0x28] sm:$0xff]
      %v1207 = vld [vmem:[#allocation4 + $0x40] sm:$0xff]
      %v1208 = vlaneseq
      %v1209 = vshrl.u32 %v1208, 7
      %v1210 = vsub.s32 0, %v1209
      %v1211 = vrot.slane %v412, %v1210
      %v1212 = vlaneseq
      %v1213 = vshrl.u32 %v1212, 7
      %v1214 = vsub.s32 4, %v1213
      %v1215 = vrot.slane %v412, %v1214
      %1216 = vrot.lane.b32.xlu0 %v1211, 2
      %v1217 = vpop.permute.xlu0 %1216
      %1218 = vrot.lane.b32.xlu0 %v1215, 2
      %v1219 = vpop.permute.xlu0 %1218
      %v1220 = vsel %vm416, %v1217, %v1219
      %vm1221 = vcmp.ne.s16.totalorder %v1217, 0
      %vm1222 = vcmp.ne.s16.totalorder %v1220, 0
      %vm1223 = vcmp.ne.s16.totalorder %v1219, 0
      %v1224 = vsel %vm1221, %v1183, 0
      %v1225 = vsel %vm1222, %v1184, 0
      %v1226 = vsel %vm1223, %v1205, 0
      %v1227 = vsel %vm1221, %v1185, 0
      %v1228 = vsel %vm1222, %v1186, 0
      %v1229 = vsel %vm1223, %v1206, 0
      %v1230 = vsel %vm1221, %v1187, 0
      %v1231 = vsel %vm1222, %v1188, 0
      %v1232 = vsel %vm1223, %v1207, 0
      %1233 = vrot.lane.b32.xlu0 %v1192, 16
      %v1234 = vpop.permute.xlu0 %1233
      %1235 = vrot.lane.b32.xlu0 %v1196, 16
      %v1236 = vpop.permute.xlu0 %1235
      %v1237 = vsel %vm426, %v1234, %v1236
      %vm1238 = vcmp.ne.s16.totalorder %v1234, 0
      %vm1239 = vcmp.ne.s16.totalorder %v1237, 0
      %vm1240 = vcmp.ne.s16.totalorder %v1236, 0
      %v1241 = vsel %vm1238, %v1183, 0
      %v1242 = vsel %vm1239, %v1184, 0
      %v1243 = vsel %vm1240, %v1205, 0
      %v1244 = vsel %vm1238, %v1185, 0
      %v1245 = vsel %vm1239, %v1186, 0
      %v1246 = vsel %vm1240, %v1206, 0
      %v1247 = vsel %vm1238, %v1187, 0
      %v1248 = vsel %vm1239, %v1188, 0
      %v1249 = vsel %vm1240, %v1207, 0
      %1250 = vrot.lane.b32.xlu0 %v1211, 18
      %v1251 = vpop.permute.xlu0 %1250
      %1252 = vrot.lane.b32.xlu0 %v1215, 18
      %v1253 = vpop.permute.xlu0 %1252
      %v1254 = vsel %vm435, %v1251, %v1253
      %vm1255 = vcmp.ne.s16.totalorder %v1251, 0
      %vm1256 = vcmp.ne.s16.totalorder %v1254, 0
      %vm1257 = vcmp.ne.s16.totalorder %v1253, 0
      %v1258 = vsel %vm1255, %v1183, 0
      %v1259 = vsel %vm1256, %v1184, 0
      %v1260 = vsel %vm1257, %v1205, 0
      %v1261 = vsel %vm1255, %v1185, 0
      %v1262 = vsel %vm1256, %v1186, 0
      %v1263 = vsel %vm1257, %v1206, 0
      %v1264 = vsel %vm1255, %v1187, 0
      %v1265 = vsel %vm1256, %v1188, 0
      %v1266 = vsel %vm1257, %v1207, 0
      %1267 = vrot.lane.b32.xlu0 %v1192, 32
      %v1268 = vpop.permute.xlu0 %1267
      %1269 = vrot.lane.b32.xlu0 %v1196, 32
      %v1270 = vpop.permute.xlu0 %1269
      %v1271 = vsel %vm444, %v1268, %v1270
      %vm1272 = vcmp.ne.s16.totalorder %v1268, 0
      %vm1273 = vcmp.ne.s16.totalorder %v1271, 0
      %vm1274 = vcmp.ne.s16.totalorder %v1270, 0
      %v1275 = vsel %vm1272, %v1183, 0
      %v1276 = vsel %vm1273, %v1184, 0
      %v1277 = vsel %vm1274, %v1205, 0
      %v1278 = vsel %vm1272, %v1185, 0
      %v1279 = vsel %vm1273, %v1186, 0
      %v1280 = vsel %vm1274, %v1206, 0
      %v1281 = vsel %vm1272, %v1187, 0
      %v1282 = vsel %vm1273, %v1188, 0
      %v1283 = vsel %vm1274, %v1207, 0
      %1284 = vrot.lane.b32.xlu0 %v1211, 34
      %v1285 = vpop.permute.xlu0 %1284
      %1286 = vrot.lane.b32.xlu0 %v1215, 34
      %v1287 = vpop.permute.xlu0 %1286
      %v1288 = vsel %vm453, %v1285, %v1287
      %vm1289 = vcmp.ne.s16.totalorder %v1285, 0
      %vm1290 = vcmp.ne.s16.totalorder %v1288, 0
      %vm1291 = vcmp.ne.s16.totalorder %v1287, 0
      %v1292 = vsel %vm1289, %v1183, 0
      %v1293 = vsel %vm1290, %v1184, 0
      %v1294 = vsel %vm1291, %v1205, 0
      %v1295 = vsel %vm1289, %v1185, 0
      %v1296 = vsel %vm1290, %v1186, 0
      %v1297 = vsel %vm1291, %v1206, 0
      %v1298 = vsel %vm1289, %v1187, 0
      %v1299 = vsel %vm1290, %v1188, 0
      %v1300 = vsel %vm1291, %v1207, 0
      %1310 = vrot.lane.b32.xlu0 %v1183, 127
      %v1311 = vpop.permute.xlu0 %1310
      %1312 = vrot.lane.b32.xlu0 %v1184, 127
      %v1313 = vpop.permute.xlu0 %1312
      %1314 = vrot.lane.b32.xlu0 %v1205, 127
      %v1315 = vpop.permute.xlu0 %1314
      %1316 = vrot.lane.b32.xlu0 %v1185, 127
      %v1317 = vpop.permute.xlu0 %1316
      %1318 = vrot.lane.b32.xlu0 %v1186, 127
      %v1319 = vpop.permute.xlu0 %1318
      %1320 = vrot.lane.b32.xlu0 %v1206, 127
      %v1321 = vpop.permute.xlu0 %1320
      %1322 = vrot.lane.b32.xlu0 %v1187, 127
      %v1323 = vpop.permute.xlu0 %1322
      %1324 = vrot.lane.b32.xlu0 %v1188, 127
      %v1325 = vpop.permute.xlu0 %1324
      %1326 = vrot.lane.b32.xlu0 %v1207, 127
      %v1327 = vpop.permute.xlu0 %1326
      %v1328 = vsel %vm478, %v1311, %v1313
      %v1329 = vsel %vm478, %v1313, %v1315
      %v1330 = vsel %vm478, %v1317, %v1319
      %v1331 = vsel %vm478, %v1319, %v1321
      %v1332 = vsel %vm478, %v1323, %v1325
      %v1333 = vsel %vm478, %v1325, %v1327
      %1349 = vrot.lane.b32.xlu0 %v1224, 126
      %v1350 = vpop.permute.xlu0 %1349
      %1351 = vrot.lane.b32.xlu0 %v1225, 126
      %v1352 = vpop.permute.xlu0 %1351
      %1353 = vrot.lane.b32.xlu0 %v1226, 126
      %v1354 = vpop.permute.xlu0 %1353
      %1355 = vrot.lane.b32.xlu0 %v1227, 126
      %v1356 = vpop.permute.xlu0 %1355
      %1357 = vrot.lane.b32.xlu0 %v1228, 126
      %v1358 = vpop.permute.xlu0 %1357
      %1359 = vrot.lane.b32.xlu0 %v1229, 126
      %v1360 = vpop.permute.xlu0 %1359
      %1361 = vrot.lane.b32.xlu0 %v1230, 126
      %v1362 = vpop.permute.xlu0 %1361
      %1363 = vrot.lane.b32.xlu0 %v1231, 126
      %v1364 = vpop.permute.xlu0 %1363
      %1365 = vrot.lane.b32.xlu0 %v1232, 126
      %v1366 = vpop.permute.xlu0 %1365
      %v1367 = vsel %vm495, %v1350, %v1352
      %v1368 = vsel %vm495, %v1352, %v1354
      %v1369 = vsel %vm495, %v1356, %v1358
      %v1370 = vsel %vm495, %v1358, %v1360
      %v1371 = vsel %vm495, %v1362, %v1364
      %v1372 = vsel %vm495, %v1364, %v1366
      %1388 = vrot.lane.b32.xlu0 %v1241, 112
      %v1389 = vpop.permute.xlu0 %1388
      %1390 = vrot.lane.b32.xlu0 %v1242, 112
      %v1391 = vpop.permute.xlu0 %1390
      %1392 = vrot.lane.b32.xlu0 %v1243, 112
      %v1393 = vpop.permute.xlu0 %1392
      %1394 = vrot.lane.b32.xlu0 %v1244, 112
      %v1395 = vpop.permute.xlu0 %1394
      %1396 = vrot.lane.b32.xlu0 %v1245, 112
      %v1397 = vpop.permute.xlu0 %1396
      %1398 = vrot.lane.b32.xlu0 %v1246, 112
      %v1399 = vpop.permute.xlu0 %1398
      %1400 = vrot.lane.b32.xlu0 %v1247, 112
      %v1401 = vpop.permute.xlu0 %1400
      %1402 = vrot.lane.b32.xlu0 %v1248, 112
      %v1403 = vpop.permute.xlu0 %1402
      %1404 = vrot.lane.b32.xlu0 %v1249, 112
      %v1405 = vpop.permute.xlu0 %1404
      %v1406 = vsel %vm512, %v1389, %v1391
      %v1407 = vsel %vm512, %v1391, %v1393
      %v1408 = vsel %vm512, %v1395, %v1397
      %v1409 = vsel %vm512, %v1397, %v1399
      %v1410 = vsel %vm512, %v1401, %v1403
      %v1411 = vsel %vm512, %v1403, %v1405
      %1418 = vrot.lane.b32.xlu0 %v1183, 111
      %v1419 = vpop.permute.xlu0 %1418
      %1420 = vrot.lane.b32.xlu0 %v1184, 111
      %v1421 = vpop.permute.xlu0 %1420
      %1422 = vrot.lane.b32.xlu0 %v1205, 111
      %v1423 = vpop.permute.xlu0 %1422
      %1424 = vrot.lane.b32.xlu0 %v1185, 111
      %v1425 = vpop.permute.xlu0 %1424
      %1426 = vrot.lane.b32.xlu0 %v1186, 111
      %v1427 = vpop.permute.xlu0 %1426
      %1428 = vrot.lane.b32.xlu0 %v1206, 111
      %v1429 = vpop.permute.xlu0 %1428
      %1430 = vrot.lane.b32.xlu0 %v1187, 111
      %v1431 = vpop.permute.xlu0 %1430
      %1432 = vrot.lane.b32.xlu0 %v1188, 111
      %v1433 = vpop.permute.xlu0 %1432
      %1434 = vrot.lane.b32.xlu0 %v1207, 111
      %v1435 = vpop.permute.xlu0 %1434
      %v1436 = vsel %vm521, %v1419, %v1421
      %v1437 = vsel %vm521, %v1421, %v1423
      %v1438 = vsel %vm521, %v1425, %v1427
      %v1439 = vsel %vm521, %v1427, %v1429
      %v1440 = vsel %vm521, %v1431, %v1433
      %v1441 = vsel %vm521, %v1433, %v1435
      %1457 = vrot.lane.b32.xlu0 %v1258, 110
      %v1458 = vpop.permute.xlu0 %1457
      %1459 = vrot.lane.b32.xlu0 %v1259, 110
      %v1460 = vpop.permute.xlu0 %1459
      %1461 = vrot.lane.b32.xlu0 %v1260, 110
      %v1462 = vpop.permute.xlu0 %1461
      %1463 = vrot.lane.b32.xlu0 %v1261, 110
      %v1464 = vpop.permute.xlu0 %1463
      %1465 = vrot.lane.b32.xlu0 %v1262, 110
      %v1466 = vpop.permute.xlu0 %1465
      %1467 = vrot.lane.b32.xlu0 %v1263, 110
      %v1468 = vpop.permute.xlu0 %1467
      %1469 = vrot.lane.b32.xlu0 %v1264, 110
      %v1470 = vpop.permute.xlu0 %1469
      %1471 = vrot.lane.b32.xlu0 %v1265, 110
      %v1472 = vpop.permute.xlu0 %1471
      %1473 = vrot.lane.b32.xlu0 %v1266, 110
      %v1474 = vpop.permute.xlu0 %1473
      %v1475 = vsel %vm538, %v1458, %v1460
      %v1476 = vsel %vm538, %v1460, %v1462
      %v1477 = vsel %vm538, %v1464, %v1466
      %v1478 = vsel %vm538, %v1466, %v1468
      %v1479 = vsel %vm538, %v1470, %v1472
      %v1480 = vsel %vm538, %v1472, %v1474
      %1496 = vrot.lane.b32.xlu0 %v1275, 96
      %v1497 = vpop.permute.xlu0 %1496
      %1498 = vrot.lane.b32.xlu0 %v1276, 96
      %v1499 = vpop.permute.xlu0 %1498
      %1500 = vrot.lane.b32.xlu0 %v1277, 96
      %v1501 = vpop.permute.xlu0 %1500
      %1502 = vrot.lane.b32.xlu0 %v1278, 96
      %v1503 = vpop.permute.xlu0 %1502
      %1504 = vrot.lane.b32.xlu0 %v1279, 96
      %v1505 = vpop.permute.xlu0 %1504
      %1506 = vrot.lane.b32.xlu0 %v1280, 96
      %v1507 = vpop.permute.xlu0 %1506
      %1508 = vrot.lane.b32.xlu0 %v1281, 96
      %v1509 = vpop.permute.xlu0 %1508
      %1510 = vrot.lane.b32.xlu0 %v1282, 96
      %v1511 = vpop.permute.xlu0 %1510
      %1512 = vrot.lane.b32.xlu0 %v1283, 96
      %v1513 = vpop.permute.xlu0 %1512
      %v1514 = vsel %vm555, %v1497, %v1499
      %v1515 = vsel %vm555, %v1499, %v1501
      %v1516 = vsel %vm555, %v1503, %v1505
      %v1517 = vsel %vm555, %v1505, %v1507
      %v1518 = vsel %vm555, %v1509, %v1511
      %v1519 = vsel %vm555, %v1511, %v1513
      %1526 = vrot.lane.b32.xlu0 %v1183, 95
      %v1527 = vpop.permute.xlu0 %1526
      %1528 = vrot.lane.b32.xlu0 %v1184, 95
      %v1529 = vpop.permute.xlu0 %1528
      %1530 = vrot.lane.b32.xlu0 %v1205, 95
      %v1531 = vpop.permute.xlu0 %1530
      %1532 = vrot.lane.b32.xlu0 %v1185, 95
      %v1533 = vpop.permute.xlu0 %1532
      %1534 = vrot.lane.b32.xlu0 %v1186, 95
      %v1535 = vpop.permute.xlu0 %1534
      %1536 = vrot.lane.b32.xlu0 %v1206, 95
      %v1537 = vpop.permute.xlu0 %1536
      %1538 = vrot.lane.b32.xlu0 %v1187, 95
      %v1539 = vpop.permute.xlu0 %1538
      %1540 = vrot.lane.b32.xlu0 %v1188, 95
      %v1541 = vpop.permute.xlu0 %1540
      %1542 = vrot.lane.b32.xlu0 %v1207, 95
      %v1543 = vpop.permute.xlu0 %1542
      %v1544 = vsel %vm564, %v1527, %v1529
      %v1545 = vsel %vm564, %v1529, %v1531
      %v1546 = vsel %vm564, %v1533, %v1535
      %v1547 = vsel %vm564, %v1535, %v1537
      %v1548 = vsel %vm564, %v1539, %v1541
      %v1549 = vsel %vm564, %v1541, %v1543
      %1565 = vrot.lane.b32.xlu0 %v1292, 94
      %v1566 = vpop.permute.xlu0 %1565
      %1567 = vrot.lane.b32.xlu0 %v1293, 94
      %v1568 = vpop.permute.xlu0 %1567
      %1569 = vrot.lane.b32.xlu0 %v1294, 94
      %v1570 = vpop.permute.xlu0 %1569
      %1571 = vrot.lane.b32.xlu0 %v1295, 94
      %v1572 = vpop.permute.xlu0 %1571
      %1573 = vrot.lane.b32.xlu0 %v1296, 94
      %v1574 = vpop.permute.xlu0 %1573
      %1575 = vrot.lane.b32.xlu0 %v1297, 94
      %v1576 = vpop.permute.xlu0 %1575
      %1577 = vrot.lane.b32.xlu0 %v1298, 94
      %v1578 = vpop.permute.xlu0 %1577
      %1579 = vrot.lane.b32.xlu0 %v1299, 94
      %v1580 = vpop.permute.xlu0 %1579
      %1581 = vrot.lane.b32.xlu0 %v1300, 94
      %v1582 = vpop.permute.xlu0 %1581
      %v1583 = vsel %vm581, %v1566, %v1568
      %v1584 = vsel %vm581, %v1568, %v1570
      %v1585 = vsel %vm581, %v1572, %v1574
      %v1586 = vsel %vm581, %v1574, %v1576
      %v1587 = vsel %vm581, %v1578, %v1580
      %v1588 = vsel %vm581, %v1580, %v1582
      %v1595 = vld [vmem:[%s3] sm:$0xff]
      %v1596 = vld [vmem:[%s3 + $0x8] sm:$0xff]
      %v1597 = vld [vmem:[%s3 + $0x10] sm:$0xff]
      %v1598 = vld [vmem:[%s3 + $0x18] sm:$0xff]
      %v1603 = vunpack.c.l.b16 %v1595
      %v1604 = vunpack.c.h.b16 %v1595
      %v1605 = vunpack.c.l.b16 %v1596
      %v1606 = vunpack.c.h.b16 %v1596
      %v1607 = vunpack.c.l.b16 %v1597
      %v1608 = vunpack.c.h.b16 %v1597
      %v1609 = vunpack.c.l.b16 %v1598
      %v1610 = vunpack.c.h.b16 %v1598
      %v1611 = vpack.c.b16 %v1607, %v1603
      %v1612 = vpack.c.b16 %v1608, %v1604
      %v1613 = vpack.c.b16 %v1609, %v1605
      %v1614 = vpack.c.b16 %v1610, %v1606
      %vm1618 = vcmask 392192
      %v1620 = vsel %vm1618, %v1614, 0
      %1622 = vmatprep.subr.bf16.mxu0 %v1200
      %1623 = vmatpush1.bf16.msra.mxu0 %v1199
      %1624 = vmatprep.subr.bf16.mxu0 %v1202
      %1625 = vmatpush1.bf16.msra.mxu0 %v1201
      %1626 = vmatprep.subr.bf16.mxu0 %v1204
      %1627 = vmatpush1.bf16.msra.mxu0 %v1203
      %1628 = vmatprep.subr.bf16.mxu0 %v1329
      %1629 = vmatpush1.bf16.msra.mxu0 %v1328
      %1630 = vmatprep.subr.bf16.mxu0 %v1331
      %1631 = vmatpush1.bf16.msra.mxu0 %v1330
      %1632 = vmatprep.subr.bf16.mxu0 %v1333
      %1633 = vmatpush1.bf16.msra.mxu0 %v1332
      %1634 = vmatprep.subr.bf16.mxu0 %v1368
      %1635 = vmatpush1.bf16.msra.mxu0 %v1367
      %1636 = vmatprep.subr.bf16.mxu0 %v1370
      %1637 = vmatpush1.bf16.msra.mxu0 %v1369
      %1638 = vmatprep.subr.bf16.mxu0 %v1372
      %1639 = vmatpush1.bf16.msra.mxu0 %v1371
      %1640 = vmatprep.subr.bf16.mxu0 %v1407
      %1641 = vmatpush1.bf16.msra.mxu0 %v1406
      %1642 = vmatprep.subr.bf16.mxu0 %v1409
      %1643 = vmatpush1.bf16.msra.mxu0 %v1408
      %1644 = vmatprep.subr.bf16.mxu0 %v1411
      %1645 = vmatpush1.bf16.msra.mxu0 %v1410
      %1646 = vmatprep.subr.bf16.mxu0 %v1437
      %1647 = vmatpush1.bf16.msra.mxu0 %v1436
      %1648 = vmatprep.subr.bf16.mxu0 %v1439
      %1649 = vmatpush1.bf16.msra.mxu0 %v1438
      %1650 = vmatprep.subr.bf16.mxu0 %v1441
      %1651 = vmatpush1.bf16.msra.mxu0 %v1440
      %1652 = vmatprep.subr.bf16.mxu0 %v1476
      %1653 = vmatpush1.bf16.msra.mxu0 %v1475
      %1654 = vmatprep.mubr.bf16.mxu0 %v1612
      %1655 = vmatmul.mubr.bf16.gmra.mrb[0].mxu0 %v1611
      %v1656 = vpop.f32.mrb[0].mxu0
      %v1657 = vadd.f32 0.0, %v1656
      %v1658 = vpop.f32.mrb[0].mxu0
      %v1659 = vadd.f32 0.0, %v1658
      %v1660 = vpop.f32.mrb[0].mxu0
      %v1661 = vadd.f32 0.0, %v1660
      %v1662 = vpop.f32.mrb[0].mxu0
      %v1663 = vadd.f32 0.0, %v1662
      %1664 = vdwg.mxu0
      %1665 = vmatprep.subr.bf16.mxu0 %v1478
      %1666 = vmatpush1.bf16.msra.mxu0 %v1477
      %1667 = vmatprep.subr.bf16.mxu0 %v1480
      %1668 = vmatpush1.bf16.msra.mxu0 %v1479
      %1669 = vmatprep.subr.bf16.mxu0 %v1515
      %1670 = vmatpush1.bf16.msra.mxu0 %v1514
      %1671 = vmatprep.subr.bf16.mxu0 %v1517
      %1672 = vmatpush1.bf16.msra.mxu0 %v1516
      %1673 = vmatprep.subr.bf16.mxu0 %v1519
      %1674 = vmatpush1.bf16.msra.mxu0 %v1518
      %1675 = vmatprep.subr.bf16.mxu0 %v1545
      %1676 = vmatpush1.bf16.msra.mxu0 %v1544
      %1677 = vmatprep.subr.bf16.mxu0 %v1547
      %1678 = vmatpush1.bf16.msra.mxu0 %v1546
      %1679 = vmatprep.subr.bf16.mxu0 %v1549
      %1680 = vmatpush1.bf16.msra.mxu0 %v1548
      %1681 = vmatprep.subr.bf16.mxu0 %v1584
      %1682 = vmatpush1.bf16.msra.mxu0 %v1583
      %1683 = vmatprep.subr.bf16.mxu0 %v1586
      %1684 = vmatpush1.bf16.msra.mxu0 %v1585
      %1685 = vmatprep.subr.bf16.mxu0 %v1588
      %1686 = vmatpush1.bf16.msra.mxu0 %v1587
      %1687 = vmatprep.subr.bf16.mxu0 0
      %1688 = vmatpush1.bf16.msra.mxu0 0
      %1689 = vmatprep.subr.bf16.mxu0 0
      %1690 = vmatpush1.bf16.msra.mxu0 0
      %1691 = vmatprep.subr.bf16.mxu0 0
      %1692 = vmatpush1.bf16.msra.mxu0 0
      %1693 = vmatprep.subr.bf16.mxu0 0
      %1694 = vmatpush1.bf16.msra.mxu0 0
      %1695 = vmatprep.subr.bf16.mxu0 0
      %1696 = vmatpush1.bf16.msra.mxu0 0
      %1697 = vmatprep.mubr.bf16.mxu0 %v1620
      %1698 = vmatmul.mubr.bf16.gmra.mrb[0].mxu0 %v1613
      %v1699 = vpop.f32.mrb[0].mxu0
      %v1700 = vadd.f32 %v1657, %v1699
      %v1701 = vpop.f32.mrb[0].mxu0
      %v1702 = vadd.f32 %v1659, %v1701
      %v1703 = vpop.f32.mrb[0].mxu0
      %v1704 = vadd.f32 %v1661, %v1703
      %v1705 = vpop.f32.mrb[0].mxu0
      %v1706 = vadd.f32 %v1663, %v1705
      %1707 = vdwg.mxu0
      %v1708 = vmax.f32 %v1700, 0.0
      %v1709 = vmax.f32 %v1702, 0.0
      %v1710 = vmax.f32 %v1704, 0.0
      %v1711 = vmax.f32 %v1706, 0.0
      %v1712 = vadd.f32 %v1708, %v1709
      %1713 = vadd.xlane.f32.xlu0 %v1712
      %v1714 = vpop.xlane.xlu0 %1713
      %v1715 = vadd.f32 %v1710, %v1711
      %1716 = vadd.xlane.f32.xlu0 %v1715
      %v1717 = vpop.xlane.xlu0 %1716
      %v1718 = vrcp.pop 256.0
      %v1719 = vmul.f32 %v1714, %v1718
      %v1720 = vmul.f32 %v1717, %v1718
      %v1721 = vld [vmem:[%s4] sm:$0xff]
      %v1722 = vld [vmem:[%s4 + $0x8] sm:$0xff]
      %v1723 = vmul.f32 %v1721, %v1719
      %v1724 = vmul.f32 %v1722, %v1720
      %v1725 = vadd.f32 %v1723, %v1724
      %v1726 = vrot.slane %v1725, 4
      %v1727 = vadd.f32 %v1725, %v1726
      %v1728 = vrot.slane %v1727, 2
      %v1729 = vadd.f32 %v1727, %v1728
      %v1730 = vrot.slane %v1729, 1
      %v1731 = vadd.f32 %v1729, %v1730
      %1732 = vst [vmem:[%s328] sm:$0x1] %v1731
      %p1733 = scmp.lt.s32.totalorder %s20, 1
      %s1734 = scalar_select %p1733, %s20, 1
      %s1735 = scalar_lea.vmem %s9, %s1734
      // Predicated region
      $region57: #{noise_regressor_forward.1} parent=55 // pred_check
        %p1736 = pneg %p232
      $region58: #{noise_regressor_forward.1} parent=55 // pred_check_branch
        %1738 = sbr.rel (%p1736) target = $region60
      $region59: #{noise_regressor_forward.1} parent=55 // pred_region
        _
      $region60: #{noise_regressor_forward.1} parent=55 // pred_fallthru
        _
    $region56: #{noise_regressor_forward.1} parent=5 // pred_fallthru
      _
    %p1739 = scmp.le.s32.totalorder 2, %s15
    // Predicated region
    $region61: #{noise_regressor_forward.1} parent=5 // pred_check
      %p1740 = pneg %p1739
    $region62: #{noise_regressor_forward.1} parent=5 // pred_check_branch
      %1742 = sbr.rel (%p1740) target = $region64
    $region63: #{noise_regressor_forward.1} parent=5 // pred_region
      %s1743 = ssub.s32 %s15, 2
      // Predicated region
      $region65: #{noise_regressor_forward.1} parent=63 // pred_check
        %p1744 = pneg %p238
      $region66: #{noise_regressor_forward.1} parent=63 // pred_check_branch
        %1746 = sbr.rel (%p1744) target = $region68
      $region67: #{noise_regressor_forward.1} parent=63 // pred_region
        %p1747 = scmp.lt.s32.totalorder %s21, 1
        %s1748 = scalar_select %p1747, %s21, 1
        %s1749 = scalar_lea.vmem %s9, %s1748
      $region68: #{noise_regressor_forward.1} parent=63 // pred_fallthru
        _
    $region64: #{noise_regressor_forward.1} parent=5 // pred_fallthru
      _
  $region6: #{noise_regressor_forward.1} parent=0 // loop_footer
    %s19 = sadd.s32 1, %s15
  $region7: #{noise_regressor_forward.1} parent=0 // loop_footer_branch
    %14 = sbr.rel target = $region3
  $region8: #{noise_regressor_forward.1} parent=0 // loop_exit
    _

</llo_original>
